<compile_context>
chip_gen: v7x
topology: tpu7x:2x2x1
jax: 0.10.0
libtpu: 0.0.40
codegen_flags: <defaults>
</compile_context>

<pallas_src>
import math

import jax
import jax.numpy as jnp
from jax.experimental import pallas as pl
from jax.experimental.pallas import tpu as pltpu

# ---------------- model hyper-parameters (small, consistent with the module) ----------
B = 2          # batch
P = 8          # patchSize == timeStep
L = P // 2     # num_patches used by PatchEncoder -> sequence length of patches
T = P * L      # time steps so that conv output length == L  (=(T-P)/P+1)
F = 3          # input channels (input_shape[1]); modal_count=1 uses channels 0:3
MODAL = 1
PROJ_PER_MODAL = 64
D = PROJ_PER_MODAL * MODAL          # projection_dim
NUM_HEADS = 2
HEAD_DIM = D // NUM_HEADS
NL = 2                               # len(convKernels) -> number of transformer layers
U = 128                              # mlp_head_units[-1]
A = 6                                # activity_count
EPS = 1e-6


# ---------------- exact GELU via Eigen/XLA float32 erf rational approximation ----------
def _erf_f32(x):
    x = jnp.clip(x, -4.0, 4.0)
    x2 = x * x
    p = jnp.float32(-2.72614225801306e-10)
    p = p * x2 + jnp.float32(2.77068142495902e-08)
    p = p * x2 + jnp.float32(-2.10102402082508e-06)
    p = p * x2 + jnp.float32(-5.69250639462346e-05)
    p = p * x2 + jnp.float32(-7.34990630326855e-04)
    p = p * x2 + jnp.float32(-2.95459980854025e-03)
    p = p * x2 + jnp.float32(-1.60960333262415e-02)
    p = p * x
    q = jnp.float32(-1.45660718464996e-05)
    q = q * x2 + jnp.float32(-2.13374055278905e-04)
    q = q * x2 + jnp.float32(-1.68282697438203e-03)
    q = q * x2 + jnp.float32(-7.37332916720468e-03)
    q = q * x2 + jnp.float32(-1.42647390514189e-02)
    return p / q


def _gelu_exact(x):
    return 0.5 * x * (1.0 + _erf_f32(x * jnp.float32(0.7071067811865476)))


def _layernorm(x, g, b):
    mu = jnp.mean(x, axis=-1, keepdims=True)
    xc = x - mu
    var = jnp.mean(xc * xc, axis=-1, keepdims=True)
    return xc * jax.lax.rsqrt(var + EPS) * g + b


# -------------------------- single fused grid-less kernel ------------------------------
def fused_model_kernel(
    x_ref, wc_ref, bc_ref, pos_ref,
    ln0_g_ref, ln0_b_ref, wqkv_ref, bqkv_ref, wout_ref, bout_ref,
    lnf_g_ref, lnf_b_ref, wh_ref, bh_ref, wl_ref, bl_ref,
    out_ref,
):
    M = x_ref.shape[0]                 # B*L rows (batch-major, patch-minor)
    Dx = wc_ref.shape[1]
    Lx = pos_ref.shape[0]
    Bc = M // Lx
    n_layers = ln0_g_ref.shape[0]
    hd = Dx // NUM_HEADS
    scale = jnp.float32(1.0 / math.sqrt(hd))

    # SensorPatches conv-as-matmul (layer_1 already folded into wc/bc) + bias
    # + PatchEncoder position-embedding add (broadcast over batch in-kernel).
    enc = jnp.dot(x_ref[...], wc_ref[...], preferred_element_type=jnp.float32) + bc_ref[...]
    pos = pos_ref[...]                                    # (L, D)
    enc = enc + jnp.concatenate([pos] * Bc, axis=0)       # row b*L+l gets pos[l]

    for layer in range(n_layers):
        ln0 = _layernorm(enc, ln0_g_ref[layer], ln0_b_ref[layer])          # (B*L, D)

        # One batched QKV projection per layer.
        qkv = jnp.dot(ln0, wqkv_ref[layer],
                      preferred_element_type=jnp.float32) + bqkv_ref[layer]  # (B*L, 3D)
        q = qkv[:, 0:Dx] * scale
        k = qkv[:, Dx:2 * Dx]
        v = qkv[:, 2 * Dx:3 * Dx]
        qs = [q[b * Lx:(b + 1) * Lx, :] for b in range(Bc)]   # each (L, D), contiguous rows
        ks = [k[b * Lx:(b + 1) * Lx, :] for b in range(Bc)]
        vs = [v[b * Lx:(b + 1) * Lx, :] for b in range(Bc)]

        # nn.MultiheadAttention with seq-first semantics: attention across the batch
        # axis, independently per patch l and head h.  Scores are BxB (=2x2) per (l,h)
        # -> computed on the VPU (elementwise mul + lane reduce), no MXU pushes.
        ctx_rows = []
        for i in range(Bc):
            head_blocks = []
            for h in range(NUM_HEADS):
                sl = slice(h * hd, (h + 1) * hd)
                s = [jnp.sum(qs[i][:, sl] * ks[j][:, sl], axis=-1, keepdims=True)
                     for j in range(Bc)]                       # each (L, 1)
                m = s[0]
                for j in range(1, Bc):
                    m = jnp.maximum(m, s[j])
                e = [jnp.exp(sj - m) for sj in s]
                denom = e[0]
                for j in range(1, Bc):
                    denom = denom + e[j]
                rinv = pl.reciprocal(denom, approx=True)
                ctx_h = (e[0] * rinv) * vs[0][:, sl]
                for j in range(1, Bc):
                    ctx_h = ctx_h + (e[j] * rinv) * vs[j][:, sl]
                head_blocks.append(ctx_h)                      # (L, hd)
            ctx_rows.append(jnp.concatenate(head_blocks, axis=-1))   # (L, D)
        ctx = jnp.concatenate(ctx_rows, axis=0)                       # (B*L, D)

        # One batched out-projection per layer (concat(heads) @ Wout + bout).
        att = jnp.dot(ctx, wout_ref[layer],
                      preferred_element_type=jnp.float32) + bout_ref[layer]

        # process_module recurrence: enc <- enc + (2*enc + attention_out)
        enc = 3.0 * enc + att
        # NOTE: layer_{i}_2_norm and layer_{i}_mlp are dead code in the reference
        # (their result never reaches the output) -> skipped.

    normed = _layernorm(enc, lnf_g_ref[...], lnf_b_ref[...])             # (B*L, D)

    # global average pool over patches (torch: norm.mean(dim=1) on (B, L, D))
    gap = jnp.concatenate(
        [jnp.mean(normed[b * Lx:(b + 1) * Lx, :], axis=0, keepdims=True)
         for b in range(Bc)],
        axis=0,
    )                                                                     # (B, D)

    # MLPHead: Linear -> exact GELU (dropout = identity at inference)
    h1 = jnp.dot(gap, wh_ref[...], preferred_element_type=jnp.float32) + bh_ref[...]
    h1 = _gelu_exact(h1)

    # logits Linear + softmax(dim=1)
    logits = jnp.dot(h1, wl_ref[...], preferred_element_type=jnp.float32) + bl_ref[...]
    logits = logits - jnp.max(logits, axis=-1, keepdims=True)
    e = jnp.exp(logits)
    out_ref[...] = e * pl.reciprocal(jnp.sum(e, axis=-1, keepdims=True), approx=True)


# ------------------------------------ glue / wrapper ------------------------------------
def init_params(key):
    ks = jax.random.split(key, 20)
    p = {}
    # layer_1: Linear(F, F) (stored (in, out)) -- folded into the patch matmul below.
    w1 = 0.3 * jax.random.normal(ks[0], (F, F), jnp.float32)
    b1 = 0.05 * jax.random.normal(ks[1], (1, F), jnp.float32)
    # SensorPatches Conv1d(3, D, kernel=P, stride=P): torch weight (D, 3, P)
    conv_w = 0.1 * jax.random.normal(ks[2], (D, 3, P), jnp.float32)
    wc = jnp.transpose(conv_w, (2, 1, 0)).reshape(P * 3, D)   # rows ordered (k, c)
    bc = 0.05 * jax.random.normal(ks[3], (1, D), jnp.float32)
    # Fold layer_1 into the conv matmul (exact, both are affine; done once at init):
    #   patch_h = patch_x @ (I_P kron w1) + (b1 tiled)   ->   enc = patch_x @ wc' + bc'
    w_block = jnp.kron(jnp.eye(P, dtype=jnp.float32), w1)     # (P*3, P*3)
    b_block = jnp.tile(b1, (1, P))                            # (1, P*3)
    p["wc"] = w_block @ wc                                    # (P*3, D)
    p["bc"] = b_block @ wc + bc                               # (1, D)
    # PatchEncoder position embedding (num_patches = P//2 = L)
    p["pos"] = 0.02 * jax.random.normal(ks[4], (L, D), jnp.float32)
    # per transformer layer (stacked over NL)
    p["ln0_g"] = 1.0 + 0.05 * jax.random.normal(ks[5], (NL, 1, D), jnp.float32)
    p["ln0_b"] = 0.05 * jax.random.normal(ks[6], (NL, 1, D), jnp.float32)
    in_proj = 0.1 * jax.random.normal(ks[7], (NL, 3 * D, D), jnp.float32)  # torch (3E, E)
    p["wqkv"] = jnp.transpose(in_proj, (0, 2, 1))                           # (NL, D, 3D)
    p["bqkv"] = 0.05 * jax.random.normal(ks[8], (NL, 1, 3 * D), jnp.float32)
    out_proj = 0.1 * jax.random.normal(ks[9], (NL, D, D), jnp.float32)      # torch (E, E)
    p["wout"] = jnp.transpose(out_proj, (0, 2, 1))
    p["bout"] = 0.05 * jax.random.normal(ks[10], (NL, 1, D), jnp.float32)
    # last norm
    p["lnf_g"] = 1.0 + 0.05 * jax.random.normal(ks[11], (1, D), jnp.float32)
    p["lnf_b"] = 0.05 * jax.random.normal(ks[12], (1, D), jnp.float32)
    # MLP head Linear(D, U)
    head_w = 0.1 * jax.random.normal(ks[13], (U, D), jnp.float32)
    p["wh"] = head_w.T
    p["bh"] = 0.05 * jax.random.normal(ks[14], (1, U), jnp.float32)
    # logits Linear(U, A)
    logits_w = 0.1 * jax.random.normal(ks[15], (A, U), jnp.float32)
    p["wl"] = logits_w.T
    p["bl"] = 0.05 * jax.random.normal(ks[16], (1, A), jnp.float32)
    return p


@jax.jit
def forward(x, p):
    Bx, Tx, Fx = x.shape
    Lx = Tx // P
    # SensorPatches (modal 0 uses channels 0:3); conv1d(k=P, stride=P) == patch matmul.
    # This reshape is a pure row-major view (zero data movement).
    patches = x[:, :, 0:3].reshape(Bx * Lx, P * 3)            # (B*L, P*3), (k,c) order
    args = (
        patches, p["wc"], p["bc"], p["pos"],
        p["ln0_g"], p["ln0_b"], p["wqkv"], p["bqkv"], p["wout"], p["bout"],
        p["lnf_g"], p["lnf_b"], p["wh"], p["bh"], p["wl"], p["bl"],
    )
    # Single grid-less kernel: everything (weights + activations) fits VMEM on
    # v5e/v6e/v7x; no cross-TC sharding (pure overhead at this size).
    return pl.pallas_call(
        fused_model_kernel,
        out_shape=jax.ShapeDtypeStruct((Bx, A), jnp.float32),
        in_specs=[pl.BlockSpec(memory_space=pltpu.MemorySpace.VMEM)] * len(args),
        out_specs=pl.BlockSpec(memory_space=pltpu.MemorySpace.VMEM),
    )(*args)                                                   # (B, A) softmax probs


if __name__ == "__main__":
    key = jax.random.PRNGKey(0)
    k_x, k_p = jax.random.split(key)
    x = jax.random.normal(k_x, (B, T, F), dtype=jnp.float32)   # (2, 32, 3)
    params = init_params(k_p)
    out = forward(x, params)
    out = jax.block_until_ready(out)
    assert out.shape == (B, A)
    print("KERNEL_OK")
</pallas_src>

<mosaic_0001>
module attributes {stable_mosaic.version = 11 : i64} {
  func.func @fused_model_kernel(%arg0: memref<8x24xf32, #tpu.memory_space<vmem>>, %arg1: memref<24x64xf32, #tpu.memory_space<vmem>>, %arg2: memref<1x64xf32, #tpu.memory_space<vmem>>, %arg3: memref<4x64xf32, #tpu.memory_space<vmem>>, %arg4: memref<2x1x64xf32, #tpu.memory_space<vmem>>, %arg5: memref<2x1x64xf32, #tpu.memory_space<vmem>>, %arg6: memref<2x64x192xf32, #tpu.memory_space<vmem>>, %arg7: memref<2x1x192xf32, #tpu.memory_space<vmem>>, %arg8: memref<2x64x64xf32, #tpu.memory_space<vmem>>, %arg9: memref<2x1x64xf32, #tpu.memory_space<vmem>>, %arg10: memref<1x64xf32, #tpu.memory_space<vmem>>, %arg11: memref<1x64xf32, #tpu.memory_space<vmem>>, %arg12: memref<64x128xf32, #tpu.memory_space<vmem>>, %arg13: memref<1x128xf32, #tpu.memory_space<vmem>>, %arg14: memref<128x6xf32, #tpu.memory_space<vmem>>, %arg15: memref<1x6xf32, #tpu.memory_space<vmem>>, %arg16: memref<2x6xf32, #tpu.memory_space<vmem>>) attributes {dimension_semantics = [], scalar_prefetch = 0 : i64, scratch_operands = 0 : i64, tpu.core_type = #tpu.core_type<tc>} {
    %c0 = arith.constant 0 : index
    %c0_0 = arith.constant 0 : index
    %0 = vector.load %arg0[%c0, %c0_0] : memref<8x24xf32, #tpu.memory_space<vmem>>, vector<8x24xf32>
    %c0_1 = arith.constant 0 : index
    %c0_2 = arith.constant 0 : index
    %1 = vector.load %arg1[%c0_1, %c0_2] : memref<24x64xf32, #tpu.memory_space<vmem>>, vector<24x64xf32>
    %cst = arith.constant dense<0.000000e+00> : vector<8x64xf32>
    %2 = tpu.matmul %0, %1, %cst {dimension_numbers = #tpu.dot_dimension_numbers<[1], [0], [0], [1], [0, 0, 1, 1], [], []>} : vector<8x24xf32>, vector<24x64xf32>, vector<8x64xf32> -> vector<8x64xf32>
    %c0_3 = arith.constant 0 : index
    %c0_4 = arith.constant 0 : index
    %3 = vector.load %arg2[%c0_3, %c0_4] : memref<1x64xf32, #tpu.memory_space<vmem>>, vector<1x64xf32>
    %4 = vector.broadcast %3 : vector<1x64xf32> to vector<8x64xf32>
    %5 = arith.addf %2, %4 : vector<8x64xf32>
    %c0_5 = arith.constant 0 : index
    %c0_6 = arith.constant 0 : index
    %6 = vector.load %arg3[%c0_5, %c0_6] : memref<4x64xf32, #tpu.memory_space<vmem>>, vector<4x64xf32>
    %7 = tpu.concatenate %6, %6 in 0 : vector<4x64xf32>, vector<4x64xf32> -> vector<8x64xf32>
    %8 = arith.addf %5, %7 : vector<8x64xf32>
    %c0_7 = arith.constant 0 : index
    %c0_8 = arith.constant 0 : index
    %c0_9 = arith.constant 0 : index
    %9 = vector.load %arg4[%c0_7, %c0_8, %c0_9] : memref<2x1x64xf32, #tpu.memory_space<vmem>>, vector<1x1x64xf32>
    %10 = vector.shape_cast %9 : vector<1x1x64xf32> to vector<1x64xf32>
    %c0_10 = arith.constant 0 : index
    %c0_11 = arith.constant 0 : index
    %c0_12 = arith.constant 0 : index
    %11 = vector.load %arg5[%c0_10, %c0_11, %c0_12] : memref<2x1x64xf32, #tpu.memory_space<vmem>>, vector<1x1x64xf32>
    %12 = vector.shape_cast %11 : vector<1x1x64xf32> to vector<1x64xf32>
    %cst_13 = arith.constant dense<0.000000e+00> : vector<8xf32>
    %13 = vector.multi_reduction <add>, %8, %cst_13 [1] : vector<8x64xf32> to vector<8xf32>
    %14 = vector.shape_cast %13 : vector<8xf32> to vector<8x1xf32>
    %cst_14 = arith.constant 6.400000e+01 : f32
    %15 = vector.broadcast %cst_14 : f32 to vector<8x1xf32>
    %16 = arith.divf %14, %15 : vector<8x1xf32>
    %17 = vector.broadcast %16 : vector<8x1xf32> to vector<8x64xf32>
    %18 = arith.subf %8, %17 : vector<8x64xf32>
    %19 = arith.mulf %18, %18 : vector<8x64xf32>
    %cst_15 = arith.constant dense<0.000000e+00> : vector<8xf32>
    %20 = vector.multi_reduction <add>, %19, %cst_15 [1] : vector<8x64xf32> to vector<8xf32>
    %21 = vector.shape_cast %20 : vector<8xf32> to vector<8x1xf32>
    %cst_16 = arith.constant 6.400000e+01 : f32
    %22 = vector.broadcast %cst_16 : f32 to vector<8x1xf32>
    %23 = arith.divf %21, %22 : vector<8x1xf32>
    %cst_17 = arith.constant 9.99999997E-7 : f32
    %24 = vector.broadcast %cst_17 : f32 to vector<8x1xf32>
    %25 = arith.addf %23, %24 : vector<8x1xf32>
    %26 = math.rsqrt %25 : vector<8x1xf32>
    %27 = vector.broadcast %26 : vector<8x1xf32> to vector<8x64xf32>
    %28 = arith.mulf %18, %27 : vector<8x64xf32>
    %29 = vector.broadcast %10 : vector<1x64xf32> to vector<8x64xf32>
    %30 = arith.mulf %28, %29 : vector<8x64xf32>
    %31 = vector.broadcast %12 : vector<1x64xf32> to vector<8x64xf32>
    %32 = arith.addf %30, %31 : vector<8x64xf32>
    %c0_18 = arith.constant 0 : index
    %c0_19 = arith.constant 0 : index
    %c0_20 = arith.constant 0 : index
    %33 = vector.load %arg6[%c0_18, %c0_19, %c0_20] : memref<2x64x192xf32, #tpu.memory_space<vmem>>, vector<1x64x192xf32>
    %34 = vector.shape_cast %33 : vector<1x64x192xf32> to vector<64x192xf32>
    %cst_21 = arith.constant dense<0.000000e+00> : vector<8x192xf32>
    %35 = tpu.matmul %32, %34, %cst_21 {dimension_numbers = #tpu.dot_dimension_numbers<[1], [0], [0], [1], [0, 0, 1, 1], [], []>} : vector<8x64xf32>, vector<64x192xf32>, vector<8x192xf32> -> vector<8x192xf32>
    %c0_22 = arith.constant 0 : index
    %c0_23 = arith.constant 0 : index
    %c0_24 = arith.constant 0 : index
    %36 = vector.load %arg7[%c0_22, %c0_23, %c0_24] : memref<2x1x192xf32, #tpu.memory_space<vmem>>, vector<1x1x192xf32>
    %37 = vector.shape_cast %36 : vector<1x1x192xf32> to vector<1x192xf32>
    %38 = vector.broadcast %37 : vector<1x192xf32> to vector<8x192xf32>
    %39 = arith.addf %35, %38 : vector<8x192xf32>
    %40 = vector.extract_strided_slice %39 {offsets = [0, 0], sizes = [8, 64], strides = [1, 1]} : vector<8x192xf32> to vector<8x64xf32>
    %cst_25 = arith.constant 0.176776692 : f32
    %41 = vector.broadcast %cst_25 : f32 to vector<8x64xf32>
    %42 = arith.mulf %40, %41 : vector<8x64xf32>
    %43 = vector.extract_strided_slice %39 {offsets = [0, 64], sizes = [8, 64], strides = [1, 1]} : vector<8x192xf32> to vector<8x64xf32>
    %44 = vector.extract_strided_slice %39 {offsets = [0, 128], sizes = [8, 64], strides = [1, 1]} : vector<8x192xf32> to vector<8x64xf32>
    %45 = vector.extract_strided_slice %42 {offsets = [0, 0], sizes = [4, 64], strides = [1, 1]} : vector<8x64xf32> to vector<4x64xf32>
    %46 = vector.extract_strided_slice %42 {offsets = [4, 0], sizes = [4, 64], strides = [1, 1]} : vector<8x64xf32> to vector<4x64xf32>
    %47 = vector.extract_strided_slice %43 {offsets = [0, 0], sizes = [4, 64], strides = [1, 1]} : vector<8x64xf32> to vector<4x64xf32>
    %48 = vector.extract_strided_slice %43 {offsets = [4, 0], sizes = [4, 64], strides = [1, 1]} : vector<8x64xf32> to vector<4x64xf32>
    %49 = vector.extract_strided_slice %44 {offsets = [0, 0], sizes = [4, 64], strides = [1, 1]} : vector<8x64xf32> to vector<4x64xf32>
    %50 = vector.extract_strided_slice %44 {offsets = [4, 0], sizes = [4, 64], strides = [1, 1]} : vector<8x64xf32> to vector<4x64xf32>
    %51 = vector.extract_strided_slice %45 {offsets = [0, 0], sizes = [4, 32], strides = [1, 1]} : vector<4x64xf32> to vector<4x32xf32>
    %52 = vector.extract_strided_slice %47 {offsets = [0, 0], sizes = [4, 32], strides = [1, 1]} : vector<4x64xf32> to vector<4x32xf32>
    %53 = arith.mulf %51, %52 : vector<4x32xf32>
    %cst_26 = arith.constant dense<0.000000e+00> : vector<4xf32>
    %54 = vector.multi_reduction <add>, %53, %cst_26 [1] : vector<4x32xf32> to vector<4xf32>
    %55 = vector.shape_cast %54 : vector<4xf32> to vector<4x1xf32>
    %56 = vector.extract_strided_slice %45 {offsets = [0, 0], sizes = [4, 32], strides = [1, 1]} : vector<4x64xf32> to vector<4x32xf32>
    %57 = vector.extract_strided_slice %48 {offsets = [0, 0], sizes = [4, 32], strides = [1, 1]} : vector<4x64xf32> to vector<4x32xf32>
    %58 = arith.mulf %56, %57 : vector<4x32xf32>
    %cst_27 = arith.constant dense<0.000000e+00> : vector<4xf32>
    %59 = vector.multi_reduction <add>, %58, %cst_27 [1] : vector<4x32xf32> to vector<4xf32>
    %60 = vector.shape_cast %59 : vector<4xf32> to vector<4x1xf32>
    %61 = arith.maximumf %55, %60 : vector<4x1xf32>
    %62 = arith.subf %55, %61 : vector<4x1xf32>
    %63 = math.exp %62 : vector<4x1xf32>
    %64 = arith.subf %60, %61 : vector<4x1xf32>
    %65 = math.exp %64 : vector<4x1xf32>
    %66 = arith.addf %63, %65 : vector<4x1xf32>
    %67 = tpu.reciprocal %66 {approx = true} : vector<4x1xf32> -> vector<4x1xf32>
    %68 = arith.mulf %63, %67 : vector<4x1xf32>
    %69 = vector.extract_strided_slice %49 {offsets = [0, 0], sizes = [4, 32], strides = [1, 1]} : vector<4x64xf32> to vector<4x32xf32>
    %70 = vector.broadcast %68 : vector<4x1xf32> to vector<4x32xf32>
    %71 = arith.mulf %70, %69 : vector<4x32xf32>
    %72 = arith.mulf %65, %67 : vector<4x1xf32>
    %73 = vector.extract_strided_slice %50 {offsets = [0, 0], sizes = [4, 32], strides = [1, 1]} : vector<4x64xf32> to vector<4x32xf32>
    %74 = vector.broadcast %72 : vector<4x1xf32> to vector<4x32xf32>
    %75 = arith.mulf %74, %73 : vector<4x32xf32>
    %76 = arith.addf %71, %75 : vector<4x32xf32>
    %77 = vector.extract_strided_slice %45 {offsets = [0, 32], sizes = [4, 32], strides = [1, 1]} : vector<4x64xf32> to vector<4x32xf32>
    %78 = vector.extract_strided_slice %47 {offsets = [0, 32], sizes = [4, 32], strides = [1, 1]} : vector<4x64xf32> to vector<4x32xf32>
    %79 = arith.mulf %77, %78 : vector<4x32xf32>
    %cst_28 = arith.constant dense<0.000000e+00> : vector<4xf32>
    %80 = vector.multi_reduction <add>, %79, %cst_28 [1] : vector<4x32xf32> to vector<4xf32>
    %81 = vector.shape_cast %80 : vector<4xf32> to vector<4x1xf32>
    %82 = vector.extract_strided_slice %45 {offsets = [0, 32], sizes = [4, 32], strides = [1, 1]} : vector<4x64xf32> to vector<4x32xf32>
    %83 = vector.extract_strided_slice %48 {offsets = [0, 32], sizes = [4, 32], strides = [1, 1]} : vector<4x64xf32> to vector<4x32xf32>
    %84 = arith.mulf %82, %83 : vector<4x32xf32>
    %cst_29 = arith.constant dense<0.000000e+00> : vector<4xf32>
    %85 = vector.multi_reduction <add>, %84, %cst_29 [1] : vector<4x32xf32> to vector<4xf32>
    %86 = vector.shape_cast %85 : vector<4xf32> to vector<4x1xf32>
    %87 = arith.maximumf %81, %86 : vector<4x1xf32>
    %88 = arith.subf %81, %87 : vector<4x1xf32>
    %89 = math.exp %88 : vector<4x1xf32>
    %90 = arith.subf %86, %87 : vector<4x1xf32>
    %91 = math.exp %90 : vector<4x1xf32>
    %92 = arith.addf %89, %91 : vector<4x1xf32>
    %93 = tpu.reciprocal %92 {approx = true} : vector<4x1xf32> -> vector<4x1xf32>
    %94 = arith.mulf %89, %93 : vector<4x1xf32>
    %95 = vector.extract_strided_slice %49 {offsets = [0, 32], sizes = [4, 32], strides = [1, 1]} : vector<4x64xf32> to vector<4x32xf32>
    %96 = vector.broadcast %94 : vector<4x1xf32> to vector<4x32xf32>
    %97 = arith.mulf %96, %95 : vector<4x32xf32>
    %98 = arith.mulf %91, %93 : vector<4x1xf32>
    %99 = vector.extract_strided_slice %50 {offsets = [0, 32], sizes = [4, 32], strides = [1, 1]} : vector<4x64xf32> to vector<4x32xf32>
    %100 = vector.broadcast %98 : vector<4x1xf32> to vector<4x32xf32>
    %101 = arith.mulf %100, %99 : vector<4x32xf32>
    %102 = arith.addf %97, %101 : vector<4x32xf32>
    %103 = tpu.concatenate %76, %102 in 1 : vector<4x32xf32>, vector<4x32xf32> -> vector<4x64xf32>
    %104 = vector.extract_strided_slice %46 {offsets = [0, 0], sizes = [4, 32], strides = [1, 1]} : vector<4x64xf32> to vector<4x32xf32>
    %105 = vector.extract_strided_slice %47 {offsets = [0, 0], sizes = [4, 32], strides = [1, 1]} : vector<4x64xf32> to vector<4x32xf32>
    %106 = arith.mulf %104, %105 : vector<4x32xf32>
    %cst_30 = arith.constant dense<0.000000e+00> : vector<4xf32>
    %107 = vector.multi_reduction <add>, %106, %cst_30 [1] : vector<4x32xf32> to vector<4xf32>
    %108 = vector.shape_cast %107 : vector<4xf32> to vector<4x1xf32>
    %109 = vector.extract_strided_slice %46 {offsets = [0, 0], sizes = [4, 32], strides = [1, 1]} : vector<4x64xf32> to vector<4x32xf32>
    %110 = vector.extract_strided_slice %48 {offsets = [0, 0], sizes = [4, 32], strides = [1, 1]} : vector<4x64xf32> to vector<4x32xf32>
    %111 = arith.mulf %109, %110 : vector<4x32xf32>
    %cst_31 = arith.constant dense<0.000000e+00> : vector<4xf32>
    %112 = vector.multi_reduction <add>, %111, %cst_31 [1] : vector<4x32xf32> to vector<4xf32>
    %113 = vector.shape_cast %112 : vector<4xf32> to vector<4x1xf32>
    %114 = arith.maximumf %108, %113 : vector<4x1xf32>
    %115 = arith.subf %108, %114 : vector<4x1xf32>
    %116 = math.exp %115 : vector<4x1xf32>
    %117 = arith.subf %113, %114 : vector<4x1xf32>
    %118 = math.exp %117 : vector<4x1xf32>
    %119 = arith.addf %116, %118 : vector<4x1xf32>
    %120 = tpu.reciprocal %119 {approx = true} : vector<4x1xf32> -> vector<4x1xf32>
    %121 = arith.mulf %116, %120 : vector<4x1xf32>
    %122 = vector.extract_strided_slice %49 {offsets = [0, 0], sizes = [4, 32], strides = [1, 1]} : vector<4x64xf32> to vector<4x32xf32>
    %123 = vector.broadcast %121 : vector<4x1xf32> to vector<4x32xf32>
    %124 = arith.mulf %123, %122 : vector<4x32xf32>
    %125 = arith.mulf %118, %120 : vector<4x1xf32>
    %126 = vector.extract_strided_slice %50 {offsets = [0, 0], sizes = [4, 32], strides = [1, 1]} : vector<4x64xf32> to vector<4x32xf32>
    %127 = vector.broadcast %125 : vector<4x1xf32> to vector<4x32xf32>
    %128 = arith.mulf %127, %126 : vector<4x32xf32>
    %129 = arith.addf %124, %128 : vector<4x32xf32>
    %130 = vector.extract_strided_slice %46 {offsets = [0, 32], sizes = [4, 32], strides = [1, 1]} : vector<4x64xf32> to vector<4x32xf32>
    %131 = vector.extract_strided_slice %47 {offsets = [0, 32], sizes = [4, 32], strides = [1, 1]} : vector<4x64xf32> to vector<4x32xf32>
    %132 = arith.mulf %130, %131 : vector<4x32xf32>
    %cst_32 = arith.constant dense<0.000000e+00> : vector<4xf32>
    %133 = vector.multi_reduction <add>, %132, %cst_32 [1] : vector<4x32xf32> to vector<4xf32>
    %134 = vector.shape_cast %133 : vector<4xf32> to vector<4x1xf32>
    %135 = vector.extract_strided_slice %46 {offsets = [0, 32], sizes = [4, 32], strides = [1, 1]} : vector<4x64xf32> to vector<4x32xf32>
    %136 = vector.extract_strided_slice %48 {offsets = [0, 32], sizes = [4, 32], strides = [1, 1]} : vector<4x64xf32> to vector<4x32xf32>
    %137 = arith.mulf %135, %136 : vector<4x32xf32>
    %cst_33 = arith.constant dense<0.000000e+00> : vector<4xf32>
    %138 = vector.multi_reduction <add>, %137, %cst_33 [1] : vector<4x32xf32> to vector<4xf32>
    %139 = vector.shape_cast %138 : vector<4xf32> to vector<4x1xf32>
    %140 = arith.maximumf %134, %139 : vector<4x1xf32>
    %141 = arith.subf %134, %140 : vector<4x1xf32>
    %142 = math.exp %141 : vector<4x1xf32>
    %143 = arith.subf %139, %140 : vector<4x1xf32>
    %144 = math.exp %143 : vector<4x1xf32>
    %145 = arith.addf %142, %144 : vector<4x1xf32>
    %146 = tpu.reciprocal %145 {approx = true} : vector<4x1xf32> -> vector<4x1xf32>
    %147 = arith.mulf %142, %146 : vector<4x1xf32>
    %148 = vector.extract_strided_slice %49 {offsets = [0, 32], sizes = [4, 32], strides = [1, 1]} : vector<4x64xf32> to vector<4x32xf32>
    %149 = vector.broadcast %147 : vector<4x1xf32> to vector<4x32xf32>
    %150 = arith.mulf %149, %148 : vector<4x32xf32>
    %151 = arith.mulf %144, %146 : vector<4x1xf32>
    %152 = vector.extract_strided_slice %50 {offsets = [0, 32], sizes = [4, 32], strides = [1, 1]} : vector<4x64xf32> to vector<4x32xf32>
    %153 = vector.broadcast %151 : vector<4x1xf32> to vector<4x32xf32>
    %154 = arith.mulf %153, %152 : vector<4x32xf32>
    %155 = arith.addf %150, %154 : vector<4x32xf32>
    %156 = tpu.concatenate %129, %155 in 1 : vector<4x32xf32>, vector<4x32xf32> -> vector<4x64xf32>
    %157 = tpu.concatenate %103, %156 in 0 : vector<4x64xf32>, vector<4x64xf32> -> vector<8x64xf32>
    %c0_34 = arith.constant 0 : index
    %c0_35 = arith.constant 0 : index
    %c0_36 = arith.constant 0 : index
    %158 = vector.load %arg8[%c0_34, %c0_35, %c0_36] : memref<2x64x64xf32, #tpu.memory_space<vmem>>, vector<1x64x64xf32>
    %159 = vector.shape_cast %158 : vector<1x64x64xf32> to vector<64x64xf32>
    %cst_37 = arith.constant dense<0.000000e+00> : vector<8x64xf32>
    %160 = tpu.matmul %157, %159, %cst_37 {dimension_numbers = #tpu.dot_dimension_numbers<[1], [0], [0], [1], [0, 0, 1, 1], [], []>} : vector<8x64xf32>, vector<64x64xf32>, vector<8x64xf32> -> vector<8x64xf32>
    %c0_38 = arith.constant 0 : index
    %c0_39 = arith.constant 0 : index
    %c0_40 = arith.constant 0 : index
    %161 = vector.load %arg9[%c0_38, %c0_39, %c0_40] : memref<2x1x64xf32, #tpu.memory_space<vmem>>, vector<1x1x64xf32>
    %162 = vector.shape_cast %161 : vector<1x1x64xf32> to vector<1x64xf32>
    %163 = vector.broadcast %162 : vector<1x64xf32> to vector<8x64xf32>
    %164 = arith.addf %160, %163 : vector<8x64xf32>
    %cst_41 = arith.constant 3.000000e+00 : f32
    %165 = vector.broadcast %cst_41 : f32 to vector<8x64xf32>
    %166 = arith.mulf %165, %8 : vector<8x64xf32>
    %167 = arith.addf %166, %164 : vector<8x64xf32>
    %c1 = arith.constant 1 : index
    %c0_42 = arith.constant 0 : index
    %c0_43 = arith.constant 0 : index
    %168 = vector.load %arg4[%c1, %c0_42, %c0_43] : memref<2x1x64xf32, #tpu.memory_space<vmem>>, vector<1x1x64xf32>
    %169 = vector.shape_cast %168 : vector<1x1x64xf32> to vector<1x64xf32>
    %c1_44 = arith.constant 1 : index
    %c0_45 = arith.constant 0 : index
    %c0_46 = arith.constant 0 : index
    %170 = vector.load %arg5[%c1_44, %c0_45, %c0_46] : memref<2x1x64xf32, #tpu.memory_space<vmem>>, vector<1x1x64xf32>
    %171 = vector.shape_cast %170 : vector<1x1x64xf32> to vector<1x64xf32>
    %cst_47 = arith.constant dense<0.000000e+00> : vector<8xf32>
    %172 = vector.multi_reduction <add>, %167, %cst_47 [1] : vector<8x64xf32> to vector<8xf32>
    %173 = vector.shape_cast %172 : vector<8xf32> to vector<8x1xf32>
    %cst_48 = arith.constant 6.400000e+01 : f32
    %174 = vector.broadcast %cst_48 : f32 to vector<8x1xf32>
    %175 = arith.divf %173, %174 : vector<8x1xf32>
    %176 = vector.broadcast %175 : vector<8x1xf32> to vector<8x64xf32>
    %177 = arith.subf %167, %176 : vector<8x64xf32>
    %178 = arith.mulf %177, %177 : vector<8x64xf32>
    %cst_49 = arith.constant dense<0.000000e+00> : vector<8xf32>
    %179 = vector.multi_reduction <add>, %178, %cst_49 [1] : vector<8x64xf32> to vector<8xf32>
    %180 = vector.shape_cast %179 : vector<8xf32> to vector<8x1xf32>
    %cst_50 = arith.constant 6.400000e+01 : f32
    %181 = vector.broadcast %cst_50 : f32 to vector<8x1xf32>
    %182 = arith.divf %180, %181 : vector<8x1xf32>
    %cst_51 = arith.constant 9.99999997E-7 : f32
    %183 = vector.broadcast %cst_51 : f32 to vector<8x1xf32>
    %184 = arith.addf %182, %183 : vector<8x1xf32>
    %185 = math.rsqrt %184 : vector<8x1xf32>
    %186 = vector.broadcast %185 : vector<8x1xf32> to vector<8x64xf32>
    %187 = arith.mulf %177, %186 : vector<8x64xf32>
    %188 = vector.broadcast %169 : vector<1x64xf32> to vector<8x64xf32>
    %189 = arith.mulf %187, %188 : vector<8x64xf32>
    %190 = vector.broadcast %171 : vector<1x64xf32> to vector<8x64xf32>
    %191 = arith.addf %189, %190 : vector<8x64xf32>
    %c1_52 = arith.constant 1 : index
    %c0_53 = arith.constant 0 : index
    %c0_54 = arith.constant 0 : index
    %192 = vector.load %arg6[%c1_52, %c0_53, %c0_54] : memref<2x64x192xf32, #tpu.memory_space<vmem>>, vector<1x64x192xf32>
    %193 = vector.shape_cast %192 : vector<1x64x192xf32> to vector<64x192xf32>
    %cst_55 = arith.constant dense<0.000000e+00> : vector<8x192xf32>
    %194 = tpu.matmul %191, %193, %cst_55 {dimension_numbers = #tpu.dot_dimension_numbers<[1], [0], [0], [1], [0, 0, 1, 1], [], []>} : vector<8x64xf32>, vector<64x192xf32>, vector<8x192xf32> -> vector<8x192xf32>
    %c1_56 = arith.constant 1 : index
    %c0_57 = arith.constant 0 : index
    %c0_58 = arith.constant 0 : index
    %195 = vector.load %arg7[%c1_56, %c0_57, %c0_58] : memref<2x1x192xf32, #tpu.memory_space<vmem>>, vector<1x1x192xf32>
    %196 = vector.shape_cast %195 : vector<1x1x192xf32> to vector<1x192xf32>
    %197 = vector.broadcast %196 : vector<1x192xf32> to vector<8x192xf32>
    %198 = arith.addf %194, %197 : vector<8x192xf32>
    %199 = vector.extract_strided_slice %198 {offsets = [0, 0], sizes = [8, 64], strides = [1, 1]} : vector<8x192xf32> to vector<8x64xf32>
    %cst_59 = arith.constant 0.176776692 : f32
    %200 = vector.broadcast %cst_59 : f32 to vector<8x64xf32>
    %201 = arith.mulf %199, %200 : vector<8x64xf32>
    %202 = vector.extract_strided_slice %198 {offsets = [0, 64], sizes = [8, 64], strides = [1, 1]} : vector<8x192xf32> to vector<8x64xf32>
    %203 = vector.extract_strided_slice %198 {offsets = [0, 128], sizes = [8, 64], strides = [1, 1]} : vector<8x192xf32> to vector<8x64xf32>
    %204 = vector.extract_strided_slice %201 {offsets = [0, 0], sizes = [4, 64], strides = [1, 1]} : vector<8x64xf32> to vector<4x64xf32>
    %205 = vector.extract_strided_slice %201 {offsets = [4, 0], sizes = [4, 64], strides = [1, 1]} : vector<8x64xf32> to vector<4x64xf32>
    %206 = vector.extract_strided_slice %202 {offsets = [0, 0], sizes = [4, 64], strides = [1, 1]} : vector<8x64xf32> to vector<4x64xf32>
    %207 = vector.extract_strided_slice %202 {offsets = [4, 0], sizes = [4, 64], strides = [1, 1]} : vector<8x64xf32> to vector<4x64xf32>
    %208 = vector.extract_strided_slice %203 {offsets = [0, 0], sizes = [4, 64], strides = [1, 1]} : vector<8x64xf32> to vector<4x64xf32>
    %209 = vector.extract_strided_slice %203 {offsets = [4, 0], sizes = [4, 64], strides = [1, 1]} : vector<8x64xf32> to vector<4x64xf32>
    %210 = vector.extract_strided_slice %204 {offsets = [0, 0], sizes = [4, 32], strides = [1, 1]} : vector<4x64xf32> to vector<4x32xf32>
    %211 = vector.extract_strided_slice %206 {offsets = [0, 0], sizes = [4, 32], strides = [1, 1]} : vector<4x64xf32> to vector<4x32xf32>
    %212 = arith.mulf %210, %211 : vector<4x32xf32>
    %cst_60 = arith.constant dense<0.000000e+00> : vector<4xf32>
    %213 = vector.multi_reduction <add>, %212, %cst_60 [1] : vector<4x32xf32> to vector<4xf32>
    %214 = vector.shape_cast %213 : vector<4xf32> to vector<4x1xf32>
    %215 = vector.extract_strided_slice %204 {offsets = [0, 0], sizes = [4, 32], strides = [1, 1]} : vector<4x64xf32> to vector<4x32xf32>
    %216 = vector.extract_strided_slice %207 {offsets = [0, 0], sizes = [4, 32], strides = [1, 1]} : vector<4x64xf32> to vector<4x32xf32>
    %217 = arith.mulf %215, %216 : vector<4x32xf32>
    %cst_61 = arith.constant dense<0.000000e+00> : vector<4xf32>
    %218 = vector.multi_reduction <add>, %217, %cst_61 [1] : vector<4x32xf32> to vector<4xf32>
    %219 = vector.shape_cast %218 : vector<4xf32> to vector<4x1xf32>
    %220 = arith.maximumf %214, %219 : vector<4x1xf32>
    %221 = arith.subf %214, %220 : vector<4x1xf32>
    %222 = math.exp %221 : vector<4x1xf32>
    %223 = arith.subf %219, %220 : vector<4x1xf32>
    %224 = math.exp %223 : vector<4x1xf32>
    %225 = arith.addf %222, %224 : vector<4x1xf32>
    %226 = tpu.reciprocal %225 {approx = true} : vector<4x1xf32> -> vector<4x1xf32>
    %227 = arith.mulf %222, %226 : vector<4x1xf32>
    %228 = vector.extract_strided_slice %208 {offsets = [0, 0], sizes = [4, 32], strides = [1, 1]} : vector<4x64xf32> to vector<4x32xf32>
    %229 = vector.broadcast %227 : vector<4x1xf32> to vector<4x32xf32>
    %230 = arith.mulf %229, %228 : vector<4x32xf32>
    %231 = arith.mulf %224, %226 : vector<4x1xf32>
    %232 = vector.extract_strided_slice %209 {offsets = [0, 0], sizes = [4, 32], strides = [1, 1]} : vector<4x64xf32> to vector<4x32xf32>
    %233 = vector.broadcast %231 : vector<4x1xf32> to vector<4x32xf32>
    %234 = arith.mulf %233, %232 : vector<4x32xf32>
    %235 = arith.addf %230, %234 : vector<4x32xf32>
    %236 = vector.extract_strided_slice %204 {offsets = [0, 32], sizes = [4, 32], strides = [1, 1]} : vector<4x64xf32> to vector<4x32xf32>
    %237 = vector.extract_strided_slice %206 {offsets = [0, 32], sizes = [4, 32], strides = [1, 1]} : vector<4x64xf32> to vector<4x32xf32>
    %238 = arith.mulf %236, %237 : vector<4x32xf32>
    %cst_62 = arith.constant dense<0.000000e+00> : vector<4xf32>
    %239 = vector.multi_reduction <add>, %238, %cst_62 [1] : vector<4x32xf32> to vector<4xf32>
    %240 = vector.shape_cast %239 : vector<4xf32> to vector<4x1xf32>
    %241 = vector.extract_strided_slice %204 {offsets = [0, 32], sizes = [4, 32], strides = [1, 1]} : vector<4x64xf32> to vector<4x32xf32>
    %242 = vector.extract_strided_slice %207 {offsets = [0, 32], sizes = [4, 32], strides = [1, 1]} : vector<4x64xf32> to vector<4x32xf32>
    %243 = arith.mulf %241, %242 : vector<4x32xf32>
    %cst_63 = arith.constant dense<0.000000e+00> : vector<4xf32>
    %244 = vector.multi_reduction <add>, %243, %cst_63 [1] : vector<4x32xf32> to vector<4xf32>
    %245 = vector.shape_cast %244 : vector<4xf32> to vector<4x1xf32>
    %246 = arith.maximumf %240, %245 : vector<4x1xf32>
    %247 = arith.subf %240, %246 : vector<4x1xf32>
    %248 = math.exp %247 : vector<4x1xf32>
    %249 = arith.subf %245, %246 : vector<4x1xf32>
    %250 = math.exp %249 : vector<4x1xf32>
    %251 = arith.addf %248, %250 : vector<4x1xf32>
    %252 = tpu.reciprocal %251 {approx = true} : vector<4x1xf32> -> vector<4x1xf32>
    %253 = arith.mulf %248, %252 : vector<4x1xf32>
    %254 = vector.extract_strided_slice %208 {offsets = [0, 32], sizes = [4, 32], strides = [1, 1]} : vector<4x64xf32> to vector<4x32xf32>
    %255 = vector.broadcast %253 : vector<4x1xf32> to vector<4x32xf32>
    %256 = arith.mulf %255, %254 : vector<4x32xf32>
    %257 = arith.mulf %250, %252 : vector<4x1xf32>
    %258 = vector.extract_strided_slice %209 {offsets = [0, 32], sizes = [4, 32], strides = [1, 1]} : vector<4x64xf32> to vector<4x32xf32>
    %259 = vector.broadcast %257 : vector<4x1xf32> to vector<4x32xf32>
    %260 = arith.mulf %259, %258 : vector<4x32xf32>
    %261 = arith.addf %256, %260 : vector<4x32xf32>
    %262 = tpu.concatenate %235, %261 in 1 : vector<4x32xf32>, vector<4x32xf32> -> vector<4x64xf32>
    %263 = vector.extract_strided_slice %205 {offsets = [0, 0], sizes = [4, 32], strides = [1, 1]} : vector<4x64xf32> to vector<4x32xf32>
    %264 = vector.extract_strided_slice %206 {offsets = [0, 0], sizes = [4, 32], strides = [1, 1]} : vector<4x64xf32> to vector<4x32xf32>
    %265 = arith.mulf %263, %264 : vector<4x32xf32>
    %cst_64 = arith.constant dense<0.000000e+00> : vector<4xf32>
    %266 = vector.multi_reduction <add>, %265, %cst_64 [1] : vector<4x32xf32> to vector<4xf32>
    %267 = vector.shape_cast %266 : vector<4xf32> to vector<4x1xf32>
    %268 = vector.extract_strided_slice %205 {offsets = [0, 0], sizes = [4, 32], strides = [1, 1]} : vector<4x64xf32> to vector<4x32xf32>
    %269 = vector.extract_strided_slice %207 {offsets = [0, 0], sizes = [4, 32], strides = [1, 1]} : vector<4x64xf32> to vector<4x32xf32>
    %270 = arith.mulf %268, %269 : vector<4x32xf32>
    %cst_65 = arith.constant dense<0.000000e+00> : vector<4xf32>
    %271 = vector.multi_reduction <add>, %270, %cst_65 [1] : vector<4x32xf32> to vector<4xf32>
    %272 = vector.shape_cast %271 : vector<4xf32> to vector<4x1xf32>
    %273 = arith.maximumf %267, %272 : vector<4x1xf32>
    %274 = arith.subf %267, %273 : vector<4x1xf32>
    %275 = math.exp %274 : vector<4x1xf32>
    %276 = arith.subf %272, %273 : vector<4x1xf32>
    %277 = math.exp %276 : vector<4x1xf32>
    %278 = arith.addf %275, %277 : vector<4x1xf32>
    %279 = tpu.reciprocal %278 {approx = true} : vector<4x1xf32> -> vector<4x1xf32>
    %280 = arith.mulf %275, %279 : vector<4x1xf32>
    %281 = vector.extract_strided_slice %208 {offsets = [0, 0], sizes = [4, 32], strides = [1, 1]} : vector<4x64xf32> to vector<4x32xf32>
    %282 = vector.broadcast %280 : vector<4x1xf32> to vector<4x32xf32>
    %283 = arith.mulf %282, %281 : vector<4x32xf32>
    %284 = arith.mulf %277, %279 : vector<4x1xf32>
    %285 = vector.extract_strided_slice %209 {offsets = [0, 0], sizes = [4, 32], strides = [1, 1]} : vector<4x64xf32> to vector<4x32xf32>
    %286 = vector.broadcast %284 : vector<4x1xf32> to vector<4x32xf32>
    %287 = arith.mulf %286, %285 : vector<4x32xf32>
    %288 = arith.addf %283, %287 : vector<4x32xf32>
    %289 = vector.extract_strided_slice %205 {offsets = [0, 32], sizes = [4, 32], strides = [1, 1]} : vector<4x64xf32> to vector<4x32xf32>
    %290 = vector.extract_strided_slice %206 {offsets = [0, 32], sizes = [4, 32], strides = [1, 1]} : vector<4x64xf32> to vector<4x32xf32>
    %291 = arith.mulf %289, %290 : vector<4x32xf32>
    %cst_66 = arith.constant dense<0.000000e+00> : vector<4xf32>
    %292 = vector.multi_reduction <add>, %291, %cst_66 [1] : vector<4x32xf32> to vector<4xf32>
    %293 = vector.shape_cast %292 : vector<4xf32> to vector<4x1xf32>
    %294 = vector.extract_strided_slice %205 {offsets = [0, 32], sizes = [4, 32], strides = [1, 1]} : vector<4x64xf32> to vector<4x32xf32>
    %295 = vector.extract_strided_slice %207 {offsets = [0, 32], sizes = [4, 32], strides = [1, 1]} : vector<4x64xf32> to vector<4x32xf32>
    %296 = arith.mulf %294, %295 : vector<4x32xf32>
    %cst_67 = arith.constant dense<0.000000e+00> : vector<4xf32>
    %297 = vector.multi_reduction <add>, %296, %cst_67 [1] : vector<4x32xf32> to vector<4xf32>
    %298 = vector.shape_cast %297 : vector<4xf32> to vector<4x1xf32>
    %299 = arith.maximumf %293, %298 : vector<4x1xf32>
    %300 = arith.subf %293, %299 : vector<4x1xf32>
    %301 = math.exp %300 : vector<4x1xf32>
    %302 = arith.subf %298, %299 : vector<4x1xf32>
    %303 = math.exp %302 : vector<4x1xf32>
    %304 = arith.addf %301, %303 : vector<4x1xf32>
    %305 = tpu.reciprocal %304 {approx = true} : vector<4x1xf32> -> vector<4x1xf32>
    %306 = arith.mulf %301, %305 : vector<4x1xf32>
    %307 = vector.extract_strided_slice %208 {offsets = [0, 32], sizes = [4, 32], strides = [1, 1]} : vector<4x64xf32> to vector<4x32xf32>
    %308 = vector.broadcast %306 : vector<4x1xf32> to vector<4x32xf32>
    %309 = arith.mulf %308, %307 : vector<4x32xf32>
    %310 = arith.mulf %303, %305 : vector<4x1xf32>
    %311 = vector.extract_strided_slice %209 {offsets = [0, 32], sizes = [4, 32], strides = [1, 1]} : vector<4x64xf32> to vector<4x32xf32>
    %312 = vector.broadcast %310 : vector<4x1xf32> to vector<4x32xf32>
    %313 = arith.mulf %312, %311 : vector<4x32xf32>
    %314 = arith.addf %309, %313 : vector<4x32xf32>
    %315 = tpu.concatenate %288, %314 in 1 : vector<4x32xf32>, vector<4x32xf32> -> vector<4x64xf32>
    %316 = tpu.concatenate %262, %315 in 0 : vector<4x64xf32>, vector<4x64xf32> -> vector<8x64xf32>
    %c1_68 = arith.constant 1 : index
    %c0_69 = arith.constant 0 : index
    %c0_70 = arith.constant 0 : index
    %317 = vector.load %arg8[%c1_68, %c0_69, %c0_70] : memref<2x64x64xf32, #tpu.memory_space<vmem>>, vector<1x64x64xf32>
    %318 = vector.shape_cast %317 : vector<1x64x64xf32> to vector<64x64xf32>
    %cst_71 = arith.constant dense<0.000000e+00> : vector<8x64xf32>
    %319 = tpu.matmul %316, %318, %cst_71 {dimension_numbers = #tpu.dot_dimension_numbers<[1], [0], [0], [1], [0, 0, 1, 1], [], []>} : vector<8x64xf32>, vector<64x64xf32>, vector<8x64xf32> -> vector<8x64xf32>
    %c1_72 = arith.constant 1 : index
    %c0_73 = arith.constant 0 : index
    %c0_74 = arith.constant 0 : index
    %320 = vector.load %arg9[%c1_72, %c0_73, %c0_74] : memref<2x1x64xf32, #tpu.memory_space<vmem>>, vector<1x1x64xf32>
    %321 = vector.shape_cast %320 : vector<1x1x64xf32> to vector<1x64xf32>
    %322 = vector.broadcast %321 : vector<1x64xf32> to vector<8x64xf32>
    %323 = arith.addf %319, %322 : vector<8x64xf32>
    %cst_75 = arith.constant 3.000000e+00 : f32
    %324 = vector.broadcast %cst_75 : f32 to vector<8x64xf32>
    %325 = arith.mulf %324, %167 : vector<8x64xf32>
    %326 = arith.addf %325, %323 : vector<8x64xf32>
    %c0_76 = arith.constant 0 : index
    %c0_77 = arith.constant 0 : index
    %327 = vector.load %arg10[%c0_76, %c0_77] : memref<1x64xf32, #tpu.memory_space<vmem>>, vector<1x64xf32>
    %c0_78 = arith.constant 0 : index
    %c0_79 = arith.constant 0 : index
    %328 = vector.load %arg11[%c0_78, %c0_79] : memref<1x64xf32, #tpu.memory_space<vmem>>, vector<1x64xf32>
    %cst_80 = arith.constant dense<0.000000e+00> : vector<8xf32>
    %329 = vector.multi_reduction <add>, %326, %cst_80 [1] : vector<8x64xf32> to vector<8xf32>
    %330 = vector.shape_cast %329 : vector<8xf32> to vector<8x1xf32>
    %cst_81 = arith.constant 6.400000e+01 : f32
    %331 = vector.broadcast %cst_81 : f32 to vector<8x1xf32>
    %332 = arith.divf %330, %331 : vector<8x1xf32>
    %333 = vector.broadcast %332 : vector<8x1xf32> to vector<8x64xf32>
    %334 = arith.subf %326, %333 : vector<8x64xf32>
    %335 = arith.mulf %334, %334 : vector<8x64xf32>
    %cst_82 = arith.constant dense<0.000000e+00> : vector<8xf32>
    %336 = vector.multi_reduction <add>, %335, %cst_82 [1] : vector<8x64xf32> to vector<8xf32>
    %337 = vector.shape_cast %336 : vector<8xf32> to vector<8x1xf32>
    %cst_83 = arith.constant 6.400000e+01 : f32
    %338 = vector.broadcast %cst_83 : f32 to vector<8x1xf32>
    %339 = arith.divf %337, %338 : vector<8x1xf32>
    %cst_84 = arith.constant 9.99999997E-7 : f32
    %340 = vector.broadcast %cst_84 : f32 to vector<8x1xf32>
    %341 = arith.addf %339, %340 : vector<8x1xf32>
    %342 = math.rsqrt %341 : vector<8x1xf32>
    %343 = vector.broadcast %342 : vector<8x1xf32> to vector<8x64xf32>
    %344 = arith.mulf %334, %343 : vector<8x64xf32>
    %345 = vector.broadcast %327 : vector<1x64xf32> to vector<8x64xf32>
    %346 = arith.mulf %344, %345 : vector<8x64xf32>
    %347 = vector.broadcast %328 : vector<1x64xf32> to vector<8x64xf32>
    %348 = arith.addf %346, %347 : vector<8x64xf32>
    %349 = vector.extract_strided_slice %348 {offsets = [0, 0], sizes = [4, 64], strides = [1, 1]} : vector<8x64xf32> to vector<4x64xf32>
    %cst_85 = arith.constant dense<0.000000e+00> : vector<64xf32>
    %350 = vector.multi_reduction <add>, %349, %cst_85 [0] : vector<4x64xf32> to vector<64xf32>
    %351 = vector.shape_cast %350 : vector<64xf32> to vector<1x64xf32>
    %cst_86 = arith.constant 4.000000e+00 : f32
    %352 = vector.broadcast %cst_86 : f32 to vector<1x64xf32>
    %353 = arith.divf %351, %352 : vector<1x64xf32>
    %354 = vector.extract_strided_slice %348 {offsets = [4, 0], sizes = [4, 64], strides = [1, 1]} : vector<8x64xf32> to vector<4x64xf32>
    %cst_87 = arith.constant dense<0.000000e+00> : vector<64xf32>
    %355 = vector.multi_reduction <add>, %354, %cst_87 [0] : vector<4x64xf32> to vector<64xf32>
    %356 = vector.shape_cast %355 : vector<64xf32> to vector<1x64xf32>
    %cst_88 = arith.constant 4.000000e+00 : f32
    %357 = vector.broadcast %cst_88 : f32 to vector<1x64xf32>
    %358 = arith.divf %356, %357 : vector<1x64xf32>
    %359 = tpu.concatenate %353, %358 in 0 : vector<1x64xf32>, vector<1x64xf32> -> vector<2x64xf32>
    %c0_89 = arith.constant 0 : index
    %c0_90 = arith.constant 0 : index
    %360 = vector.load %arg12[%c0_89, %c0_90] : memref<64x128xf32, #tpu.memory_space<vmem>>, vector<64x128xf32>
    %cst_91 = arith.constant dense<0.000000e+00> : vector<2x128xf32>
    %361 = tpu.matmul %359, %360, %cst_91 {dimension_numbers = #tpu.dot_dimension_numbers<[1], [0], [0], [1], [0, 0, 1, 1], [], []>} : vector<2x64xf32>, vector<64x128xf32>, vector<2x128xf32> -> vector<2x128xf32>
    %c0_92 = arith.constant 0 : index
    %c0_93 = arith.constant 0 : index
    %362 = vector.load %arg13[%c0_92, %c0_93] : memref<1x128xf32, #tpu.memory_space<vmem>>, vector<1x128xf32>
    %363 = vector.broadcast %362 : vector<1x128xf32> to vector<2x128xf32>
    %364 = arith.addf %361, %363 : vector<2x128xf32>
    %cst_94 = arith.constant 5.000000e-01 : f32
    %365 = vector.broadcast %cst_94 : f32 to vector<2x128xf32>
    %366 = arith.mulf %365, %364 : vector<2x128xf32>
    %cst_95 = arith.constant 0.707106769 : f32
    %367 = vector.broadcast %cst_95 : f32 to vector<2x128xf32>
    %368 = arith.mulf %364, %367 : vector<2x128xf32>
    %cst_96 = arith.constant -4.000000e+00 : f32
    %cst_97 = arith.constant 4.000000e+00 : f32
    %369 = vector.broadcast %cst_96 : f32 to vector<2x128xf32>
    %370 = arith.maximumf %369, %368 : vector<2x128xf32>
    %371 = vector.broadcast %cst_97 : f32 to vector<2x128xf32>
    %372 = arith.minimumf %371, %370 : vector<2x128xf32>
    %373 = arith.mulf %372, %372 : vector<2x128xf32>
    %cst_98 = arith.constant -2.72614237E-10 : f32
    %374 = vector.broadcast %cst_98 : f32 to vector<2x128xf32>
    %375 = arith.mulf %374, %373 : vector<2x128xf32>
    %cst_99 = arith.constant 2.77068146E-8 : f32
    %376 = vector.broadcast %cst_99 : f32 to vector<2x128xf32>
    %377 = arith.addf %375, %376 : vector<2x128xf32>
    %378 = arith.mulf %377, %373 : vector<2x128xf32>
    %cst_100 = arith.constant -2.10102394E-6 : f32
    %379 = vector.broadcast %cst_100 : f32 to vector<2x128xf32>
    %380 = arith.addf %378, %379 : vector<2x128xf32>
    %381 = arith.mulf %380, %373 : vector<2x128xf32>
    %cst_101 = arith.constant -5.69250624E-5 : f32
    %382 = vector.broadcast %cst_101 : f32 to vector<2x128xf32>
    %383 = arith.addf %381, %382 : vector<2x128xf32>
    %384 = arith.mulf %383, %373 : vector<2x128xf32>
    %cst_102 = arith.constant -7.34990637E-4 : f32
    %385 = vector.broadcast %cst_102 : f32 to vector<2x128xf32>
    %386 = arith.addf %384, %385 : vector<2x128xf32>
    %387 = arith.mulf %386, %373 : vector<2x128xf32>
    %cst_103 = arith.constant -2.954600e-03 : f32
    %388 = vector.broadcast %cst_103 : f32 to vector<2x128xf32>
    %389 = arith.addf %387, %388 : vector<2x128xf32>
    %390 = arith.mulf %389, %373 : vector<2x128xf32>
    %cst_104 = arith.constant -0.0160960332 : f32
    %391 = vector.broadcast %cst_104 : f32 to vector<2x128xf32>
    %392 = arith.addf %390, %391 : vector<2x128xf32>
    %393 = arith.mulf %392, %372 : vector<2x128xf32>
    %cst_105 = arith.constant -1.45660715E-5 : f32
    %394 = vector.broadcast %cst_105 : f32 to vector<2x128xf32>
    %395 = arith.mulf %394, %373 : vector<2x128xf32>
    %cst_106 = arith.constant -2.13374049E-4 : f32
    %396 = vector.broadcast %cst_106 : f32 to vector<2x128xf32>
    %397 = arith.addf %395, %396 : vector<2x128xf32>
    %398 = arith.mulf %397, %373 : vector<2x128xf32>
    %cst_107 = arith.constant -0.00168282702 : f32
    %399 = vector.broadcast %cst_107 : f32 to vector<2x128xf32>
    %400 = arith.addf %398, %399 : vector<2x128xf32>
    %401 = arith.mulf %400, %373 : vector<2x128xf32>
    %cst_108 = arith.constant -0.00737332925 : f32
    %402 = vector.broadcast %cst_108 : f32 to vector<2x128xf32>
    %403 = arith.addf %401, %402 : vector<2x128xf32>
    %404 = arith.mulf %403, %373 : vector<2x128xf32>
    %cst_109 = arith.constant -0.0142647391 : f32
    %405 = vector.broadcast %cst_109 : f32 to vector<2x128xf32>
    %406 = arith.addf %404, %405 : vector<2x128xf32>
    %407 = arith.divf %393, %406 : vector<2x128xf32>
    %cst_110 = arith.constant 1.000000e+00 : f32
    %408 = vector.broadcast %cst_110 : f32 to vector<2x128xf32>
    %409 = arith.addf %408, %407 : vector<2x128xf32>
    %410 = arith.mulf %366, %409 : vector<2x128xf32>
    %c0_111 = arith.constant 0 : index
    %c0_112 = arith.constant 0 : index
    %411 = vector.load %arg14[%c0_111, %c0_112] : memref<128x6xf32, #tpu.memory_space<vmem>>, vector<128x6xf32>
    %cst_113 = arith.constant dense<0.000000e+00> : vector<2x6xf32>
    %412 = tpu.matmul %410, %411, %cst_113 {dimension_numbers = #tpu.dot_dimension_numbers<[1], [0], [0], [1], [0, 0, 1, 1], [], []>} : vector<2x128xf32>, vector<128x6xf32>, vector<2x6xf32> -> vector<2x6xf32>
    %c0_114 = arith.constant 0 : index
    %c0_115 = arith.constant 0 : index
    %413 = vector.load %arg15[%c0_114, %c0_115] : memref<1x6xf32, #tpu.memory_space<vmem>>, vector<1x6xf32>
    %414 = vector.broadcast %413 : vector<1x6xf32> to vector<2x6xf32>
    %415 = arith.addf %412, %414 : vector<2x6xf32>
    %cst_116 = arith.constant dense<0xFF800000> : vector<2xf32>
    %416 = vector.multi_reduction <maximumf>, %415, %cst_116 [1] : vector<2x6xf32> to vector<2xf32>
    %417 = vector.shape_cast %416 : vector<2xf32> to vector<2x1xf32>
    %418 = vector.broadcast %417 : vector<2x1xf32> to vector<2x6xf32>
    %419 = arith.subf %415, %418 : vector<2x6xf32>
    %420 = math.exp %419 : vector<2x6xf32>
    %cst_117 = arith.constant dense<0.000000e+00> : vector<2xf32>
    %421 = vector.multi_reduction <add>, %420, %cst_117 [1] : vector<2x6xf32> to vector<2xf32>
    %422 = vector.shape_cast %421 : vector<2xf32> to vector<2x1xf32>
    %423 = tpu.reciprocal %422 {approx = true} : vector<2x1xf32> -> vector<2x1xf32>
    %424 = vector.broadcast %423 : vector<2x1xf32> to vector<2x6xf32>
    %425 = arith.mulf %420, %424 : vector<2x6xf32>
    %c0_118 = arith.constant 0 : index
    %c0_119 = arith.constant 0 : index
    %426 = vector.load %arg16[%c0_118, %c0_119] : memref<2x6xf32, #tpu.memory_space<vmem>>, vector<2x6xf32>
    tpu.vector_store %arg16[%c0_118, %c0_119], %425 {strides = array<i32>} : memref<2x6xf32, #tpu.memory_space<vmem>>, vector<2x6xf32>,
    return
  }
}

</mosaic_0001>

<llo_original>
// kernel: forward.1
$region0: #{forward.1}
  #allocation0 [shape = 'u32[]', space=smem, size = 0x4, offset = 0x4, fixed_abs, tag = 'smem constant byte address 0x4 - core index']
  #allocation1 [shape = 'u32[144,128]{1,0:T(1,128)}', space=vmem, size = 0x12000, scoped, tag = 'internal scratch']
  %s0 = inlined_call_operand.vmem [shape: f32[8,24], index: 0, kind: input, shape index: {}]
  %s1 = inlined_call_operand.hbm [shape: f32[24,64], index: 1, kind: input, shape index: {}]
  %s2 = inlined_call_operand.hbm [shape: f32[1,64], index: 2, kind: input, shape index: {}]
  %s3 = inlined_call_operand.vmem [shape: f32[4,64], index: 3, kind: input, shape index: {}]
  %s4 = inlined_call_operand.vmem [shape: f32[2,1,64], index: 4, kind: input, shape index: {}]
  %s5 = inlined_call_operand.vmem [shape: f32[2,1,64], index: 5, kind: input, shape index: {}]
  %s6 = inlined_call_operand.vmem [shape: f32[2,64,192], index: 6, kind: input, shape index: {}]
  %s7 = inlined_call_operand.vmem [shape: f32[2,1,192], index: 7, kind: input, shape index: {}]
  %s8 = inlined_call_operand.hbm [shape: f32[2,64,64], index: 8, kind: input, shape index: {}]
  %s9 = inlined_call_operand.vmem [shape: f32[2,1,64], index: 9, kind: input, shape index: {}]
  %s10 = inlined_call_operand.hbm [shape: f32[1,64], index: 10, kind: input, shape index: {}]
  %s11 = inlined_call_operand.hbm [shape: f32[1,64], index: 11, kind: input, shape index: {}]
  %s12 = inlined_call_operand.vmem [shape: f32[64,128], index: 12, kind: input, shape index: {}]
  %s13 = inlined_call_operand.hbm [shape: f32[1,128], index: 13, kind: input, shape index: {}]
  %s14 = inlined_call_operand.vmem [shape: f32[128,6], index: 14, kind: input, shape index: {}]
  %s15 = inlined_call_operand.hbm [shape: f32[1,6], index: 15, kind: input, shape index: {}]
  %s16 = inlined_call_operand.hbm [shape: f32[2,6], index: 16, kind: output, shape index: {}]
  %s17 = sld [smem:[#allocation0]]
  $region102: #{forward.1} parent=0
    _
  %s19 = ssub.s32 1, %s17
  %s20 = scalar_select 0, %s19, %s17
  $region1: #{forward.1} parent=0
    #allocation2 [shape = 'u8[12288]{0}', space=vmem, size = 0x3000, scoped, tag = 'input window, operand 1, single buffered']
    #allocation3 [shape = 's32[1]{0}', space=sflag, size = 0x4, scoped, tag = 'scoped memory for forward.1']
    #allocation4 [shape = 's32[1]{0}', space=sflag, size = 0x4, scoped, tag = 'scoped memory for forward.1']
    #allocation5 [shape = 'u8[512]{0}', space=vmem, size = 0x400, scoped, tag = 'input window, operand 2, single buffered']
    #allocation6 [shape = 's32[1]{0}', space=sflag, size = 0x4, scoped, tag = 'scoped memory for forward.1']
    #allocation7 [shape = 'u8[65536]{0}', space=vmem, size = 0x10000, scoped, tag = 'input window, operand 8, single buffered']
    #allocation8 [shape = 'u8[512]{0}', space=vmem, size = 0x400, scoped, tag = 'input window, operand 10, single buffered']
    #allocation9 [shape = 's32[1]{0}', space=sflag, size = 0x4, scoped, tag = 'scoped memory for forward.1']
    #allocation10 [shape = 'u8[512]{0}', space=vmem, size = 0x400, scoped, tag = 'input window, operand 11, single buffered']
    #allocation11 [shape = 'u8[512]{0}', space=vmem, size = 0x400, scoped, tag = 'input window, operand 13, single buffered']
    #allocation12 [shape = 's32[1]{0}', space=sflag, size = 0x4, scoped, tag = 'scoped memory for forward.1']
    #allocation13 [shape = 'u8[512]{0}', space=vmem, size = 0x400, scoped, tag = 'input window, operand 15, single buffered']
    #allocation14 [shape = 'u8[1024]{0}', space=vmem, size = 0x400, scoped, tag = 'output window, operand 0, single buffered']
    %21 = vsyncpa [#allocation3], 0
    %22 = vsyncpa [#allocation6], 0
    %23 = vsyncpa [#allocation9], 0
    %24 = vsyncpa [#allocation12], 0
    %25 = vsyncpa [#allocation4], 0
    // Predicated region
    $region2: #{forward.1} parent=1 // pred_check
      _
    $region3: #{forward.1} parent=1 // pred_check_branch
      %27 = sbr.rel (0) target = $region5
    $region4: #{forward.1} parent=1 // pred_region
      _
    $region5: #{forward.1} parent=1 // pred_fallthru
      _
    // Predicated region
    $region6: #{forward.1} parent=1 // pred_check
      _
    $region7: #{forward.1} parent=1 // pred_check_branch
      %29 = sbr.rel (0) target = $region9
    $region8: #{forward.1} parent=1 // pred_region
      %s31 = ssub.s32 384, 384
      %32 = vsyncadd [#allocation3], %s31
      %s33 = sshll.u32 [#allocation2], 4
      %s34 = int_to_ptr.vmem [resolvable:$true] %s33
      %39 = dma.hbm_to_vmem [thread:$0]  %s1, 384, %s34, [#allocation3], 128, 128, 8
    $region9: #{forward.1} parent=1 // pred_fallthru
      _
    // Predicated region
    $region10: #{forward.1} parent=1 // pred_check
      _
    $region11: #{forward.1} parent=1 // pred_check_branch
      %41 = sbr.rel (0) target = $region13
    $region12: #{forward.1} parent=1 // pred_region
      %s43 = ssub.s32 16, 16
      %44 = vsyncadd [#allocation6], %s43
      %s46 = sshll.u32 [#allocation5], 4
      %s47 = int_to_ptr.vmem [resolvable:$true] %s46
      %49 = dma.hbm_to_vmem [thread:$0]  %s2, 16, %s47, [#allocation6]
    $region13: #{forward.1} parent=1 // pred_fallthru
      _
    // Predicated region
    $region14: #{forward.1} parent=1 // pred_check
      _
    $region15: #{forward.1} parent=1 // pred_check_branch
      %51 = sbr.rel (0) target = $region17
    $region16: #{forward.1} parent=1 // pred_region
      _
    $region17: #{forward.1} parent=1 // pred_fallthru
      _
    // Predicated region
    $region18: #{forward.1} parent=1 // pred_check
      _
    $region19: #{forward.1} parent=1 // pred_check_branch
      %53 = sbr.rel (0) target = $region21
    $region20: #{forward.1} parent=1 // pred_region
      _
    $region21: #{forward.1} parent=1 // pred_fallthru
      _
    // Predicated region
    $region22: #{forward.1} parent=1 // pred_check
      _
    $region23: #{forward.1} parent=1 // pred_check_branch
      %55 = sbr.rel (0) target = $region25
    $region24: #{forward.1} parent=1 // pred_region
      _
    $region25: #{forward.1} parent=1 // pred_fallthru
      _
    // Predicated region
    $region26: #{forward.1} parent=1 // pred_check
      _
    $region27: #{forward.1} parent=1 // pred_check_branch
      %57 = sbr.rel (0) target = $region29
    $region28: #{forward.1} parent=1 // pred_region
      _
    $region29: #{forward.1} parent=1 // pred_fallthru
      _
    // Predicated region
    $region30: #{forward.1} parent=1 // pred_check
      _
    $region31: #{forward.1} parent=1 // pred_check_branch
      %59 = sbr.rel (0) target = $region33
    $region32: #{forward.1} parent=1 // pred_region
      _
    $region33: #{forward.1} parent=1 // pred_fallthru
      _
    // Predicated region
    $region34: #{forward.1} parent=1 // pred_check
      _
    $region35: #{forward.1} parent=1 // pred_check_branch
      %61 = sbr.rel (0) target = $region37
    $region36: #{forward.1} parent=1 // pred_region
      %s63 = ssub.s32 2048, 2048
      %64 = vsyncadd [#allocation6], %s63
      %s65 = sshll.u32 [#allocation7], 4
      %s66 = int_to_ptr.vmem [resolvable:$true] %s65
      %71 = dma.hbm_to_vmem [thread:$0]  %s8, 2048, %s66, [#allocation6], 128, 128, 8
    $region37: #{forward.1} parent=1 // pred_fallthru
      _
    // Predicated region
    $region38: #{forward.1} parent=1 // pred_check
      _
    $region39: #{forward.1} parent=1 // pred_check_branch
      %73 = sbr.rel (0) target = $region41
    $region40: #{forward.1} parent=1 // pred_region
      _
    $region41: #{forward.1} parent=1 // pred_fallthru
      _
    // Predicated region
    $region42: #{forward.1} parent=1 // pred_check
      _
    $region43: #{forward.1} parent=1 // pred_check_branch
      %75 = sbr.rel (0) target = $region45
    $region44: #{forward.1} parent=1 // pred_region
      %s77 = ssub.s32 16, 16
      %78 = vsyncadd [#allocation9], %s77
      %s80 = sshll.u32 [#allocation8], 4
      %s81 = int_to_ptr.vmem [resolvable:$true] %s80
      %83 = dma.hbm_to_vmem [thread:$0]  %s10, 16, %s81, [#allocation9]
    $region45: #{forward.1} parent=1 // pred_fallthru
      _
    // Predicated region
    $region46: #{forward.1} parent=1 // pred_check
      _
    $region47: #{forward.1} parent=1 // pred_check_branch
      %85 = sbr.rel (0) target = $region49
    $region48: #{forward.1} parent=1 // pred_region
      %s87 = ssub.s32 16, 16
      %88 = vsyncadd [#allocation9], %s87
      %s90 = sshll.u32 [#allocation10], 4
      %s91 = int_to_ptr.vmem [resolvable:$true] %s90
      %93 = dma.hbm_to_vmem [thread:$0]  %s11, 16, %s91, [#allocation9]
    $region49: #{forward.1} parent=1 // pred_fallthru
      _
    // Predicated region
    $region50: #{forward.1} parent=1 // pred_check
      _
    $region51: #{forward.1} parent=1 // pred_check_branch
      %95 = sbr.rel (0) target = $region53
    $region52: #{forward.1} parent=1 // pred_region
      _
    $region53: #{forward.1} parent=1 // pred_fallthru
      _
    // Predicated region
    $region54: #{forward.1} parent=1 // pred_check
      _
    $region55: #{forward.1} parent=1 // pred_check_branch
      %97 = sbr.rel (0) target = $region57
    $region56: #{forward.1} parent=1 // pred_region
      %s99 = ssub.s32 16, 16
      %100 = vsyncadd [#allocation12], %s99
      %s102 = sshll.u32 [#allocation11], 4
      %s103 = int_to_ptr.vmem [resolvable:$true] %s102
      %105 = dma.hbm_to_vmem [thread:$0]  %s13, 16, %s103, [#allocation12]
    $region57: #{forward.1} parent=1 // pred_fallthru
      _
    // Predicated region
    $region58: #{forward.1} parent=1 // pred_check
      _
    $region59: #{forward.1} parent=1 // pred_check_branch
      %107 = sbr.rel (0) target = $region61
    $region60: #{forward.1} parent=1 // pred_region
      _
    $region61: #{forward.1} parent=1 // pred_fallthru
      _
    // Predicated region
    $region62: #{forward.1} parent=1 // pred_check
      _
    $region63: #{forward.1} parent=1 // pred_check_branch
      %109 = sbr.rel (0) target = $region65
    $region64: #{forward.1} parent=1 // pred_region
      %s111 = ssub.s32 16, 16
      %112 = vsyncadd [#allocation12], %s111
      %s114 = sshll.u32 [#allocation13], 4
      %s115 = int_to_ptr.vmem [resolvable:$true] %s114
      %117 = dma.hbm_to_vmem [thread:$0]  %s15, 16, %s115, [#allocation12]
    $region65: #{forward.1} parent=1 // pred_fallthru
      _
    // Predicated region
    $region66: #{forward.1} parent=1 // pred_check
      _
    $region67: #{forward.1} parent=1 // pred_check_branch
      %119 = sbr.rel (0) target = $region69
    $region68: #{forward.1} parent=1 // pred_region
      %120 = dma.done [#allocation3], 384
    $region69: #{forward.1} parent=1 // pred_fallthru
      _
    // Predicated region
    $region70: #{forward.1} parent=1 // pred_check
      _
    $region71: #{forward.1} parent=1 // pred_check_branch
      %122 = sbr.rel (0) target = $region73
    $region72: #{forward.1} parent=1 // pred_region
      %123 = dma.done [#allocation6], 16
    $region73: #{forward.1} parent=1 // pred_fallthru
      _
    // Predicated region
    $region74: #{forward.1} parent=1 // pred_check
      _
    $region75: #{forward.1} parent=1 // pred_check_branch
      %125 = sbr.rel (0) target = $region77
    $region76: #{forward.1} parent=1 // pred_region
      %126 = dma.done [#allocation6], 2048
    $region77: #{forward.1} parent=1 // pred_fallthru
      _
    // Predicated region
    $region78: #{forward.1} parent=1 // pred_check
      _
    $region79: #{forward.1} parent=1 // pred_check_branch
      %128 = sbr.rel (0) target = $region81
    $region80: #{forward.1} parent=1 // pred_region
      %129 = dma.done [#allocation9], 16
    $region81: #{forward.1} parent=1 // pred_fallthru
      _
    // Predicated region
    $region82: #{forward.1} parent=1 // pred_check
      _
    $region83: #{forward.1} parent=1 // pred_check_branch
      %131 = sbr.rel (0) target = $region85
    $region84: #{forward.1} parent=1 // pred_region
      %132 = dma.done [#allocation9], 16
    $region85: #{forward.1} parent=1 // pred_fallthru
      _
    // Predicated region
    $region86: #{forward.1} parent=1 // pred_check
      _
    $region87: #{forward.1} parent=1 // pred_check_branch
      %134 = sbr.rel (0) target = $region89
    $region88: #{forward.1} parent=1 // pred_region
      %135 = dma.done [#allocation12], 16
    $region89: #{forward.1} parent=1 // pred_fallthru
      _
    // Predicated region
    $region90: #{forward.1} parent=1 // pred_check
      _
    $region91: #{forward.1} parent=1 // pred_check_branch
      %137 = sbr.rel (0) target = $region93
    $region92: #{forward.1} parent=1 // pred_region
      %138 = dma.done [#allocation12], 16
    $region93: #{forward.1} parent=1 // pred_fallthru
      _
    %v139 = vld [vmem:[%s0] sm:$0xff]
    %v140 = vld [vmem:[#allocation2] sm:$0xff]
    %v141 = vld [vmem:[#allocation2 + $0x8] sm:$0xff]
    %v142 = vld [vmem:[#allocation2 + $0x10] sm:$0xff]
    %v143 = vld [vmem:[#allocation5] sm:$0x1]
    %v145 = vlaneseq
    %v146 = vshrl.u32 %v145, 7
    %v147 = vsub.s32 0, %v146
    %v148 = vrot.slane %v143, %v147
    %vm150 = vcmask 195584
    %v152 = vsel %vm150, %v139, 0
    %154 = vmatprep.subr.mxu0 0.0
    %155 = vmatpush1.msra.mxu0 %v140
    %156 = vmatprep.subr.mxu0 0.0
    %157 = vmatpush1.msra.mxu0 %v141
    %158 = vmatprep.subr.mxu0 0.0
    %159 = vmatpush1.msra.mxu0 %v142
    %160 = vmatprep.subr.mxu0 0.0
    %161 = vmatpush1.msra.mxu0 0.0
    %162 = vmatprep.subr.mxu0 0.0
    %163 = vmatpush1.msra.mxu0 0.0
    %164 = vmatprep.subr.mxu0 0.0
    %165 = vmatpush1.msra.mxu0 0.0
    %166 = vmatprep.subr.mxu0 0.0
    %167 = vmatpush1.msra.mxu0 0.0
    %168 = vmatprep.subr.mxu0 0.0
    %169 = vmatpush1.msra.mxu0 0.0
    %170 = vmatprep.subr.mxu0 0.0
    %171 = vmatpush1.msra.mxu0 0.0
    %172 = vmatprep.subr.mxu0 0.0
    %173 = vmatpush1.msra.mxu0 0.0
    %174 = vmatprep.subr.mxu0 0.0
    %175 = vmatpush1.msra.mxu0 0.0
    %176 = vmatprep.subr.mxu0 0.0
    %177 = vmatpush1.msra.mxu0 0.0
    %178 = vmatprep.subr.mxu0 0.0
    %179 = vmatpush1.msra.mxu0 0.0
    %180 = vmatprep.subr.mxu0 0.0
    %181 = vmatpush1.msra.mxu0 0.0
    %182 = vmatprep.subr.mxu0 0.0
    %183 = vmatpush1.msra.mxu0 0.0
    %184 = vmatprep.subr.mxu0 0.0
    %185 = vmatpush1.msra.mxu0 0.0
    %186 = vmatprep.subr.mxu0 0.0
    %187 = vmatpush1.msra.mxu0 0.0
    %188 = vmatprep.subr.mxu0 0.0
    %189 = vmatpush1.msra.mxu0 0.0
    %190 = vmatprep.subr.mxu0 0.0
    %191 = vmatpush1.msra.mxu0 0.0
    %192 = vmatprep.subr.mxu0 0.0
    %193 = vmatpush1.msra.mxu0 0.0
    %194 = vmatprep.subr.mxu0 0.0
    %195 = vmatpush1.msra.mxu0 0.0
    %196 = vmatprep.subr.mxu0 0.0
    %197 = vmatpush1.msra.mxu0 0.0
    %198 = vmatprep.subr.mxu0 0.0
    %199 = vmatpush1.msra.mxu0 0.0
    %200 = vmatprep.subr.mxu0 0.0
    %201 = vmatpush1.msra.mxu0 0.0
    %202 = vmatprep.subr.mxu0 0.0
    %203 = vmatpush1.msra.mxu0 0.0
    %204 = vmatprep.subr.mxu0 0.0
    %205 = vmatpush1.msra.mxu0 0.0
    %206 = vmatprep.subr.mxu0 0.0
    %207 = vmatpush1.msra.mxu0 0.0
    %208 = vmatprep.subr.mxu0 0.0
    %209 = vmatpush1.msra.mxu0 0.0
    %210 = vmatprep.subr.mxu0 0.0
    %211 = vmatpush1.msra.mxu0 0.0
    %212 = vmatprep.subr.mxu0 0.0
    %213 = vmatpush1.msra.mxu0 0.0
    %214 = vmatprep.subr.mxu0 0.0
    %215 = vmatpush1.msra.mxu0 0.0
    %216 = vmatprep.subr.mxu0 0.0
    %217 = vmatpush1.msra.mxu0 0.0
    %218 = vmatprep.mubr.f32.mxu0 0.0
    %219 = vmatmul.mubr.f32.gmra.mrb[0].mxu0 %v152
    %v220 = vpop.f32.mrb[0].mxu0
    %v221 = vadd.f32 %v148, %v220
    %v222 = vpop.f32.mrb[0].mxu0
    %223 = vdwg.mxu0
    %v224 = vld [vmem:[%s3] sm:$0xf]
    %v226 = vrot.slane %v224, 4
    %vm228 = vcmask 1043456
    %v229 = vsel %vm228, %v224, %v226
    %v230 = vadd.f32 %v221, %v229
    %v231 = vld [vmem:[%s4] sm:$0x1]
    %v232 = vld [vmem:[%s5] sm:$0x1]
    %vm233 = vcmask 523264
    %v234 = vsel %vm233, %v230, 0.0
    %235 = vadd.xlane.f32.xlu0 %v234
    %v236 = vpop.xlane.xlu0 %235
    %v237 = vrcp.pop 64.0
    %v238 = vmul.f32 %v236, %v237
    %v239 = vsub.f32 %v230, %v238
    %v240 = vmul.f32 %v239, %v239
    %v241 = vsel %vm233, %v240, 0.0
    %242 = vadd.xlane.f32.xlu0 %v241
    %v243 = vpop.xlane.xlu0 %242
    %v244 = vmul.f32 %v243, %v237
    %v245 = vadd.f32 %v244, 1e-06
    %v246 = vrsqrt.pop %v245
    %v247 = vmul.f32 %v239, %v246
    %v249 = vlaneseq
    %v250 = vshrl.u32 %v249, 7
    %v251 = vsub.s32 0, %v250
    %v252 = vrot.slane %v231, %v251
    %v254 = vmul.f32 %v247, %v252
    %v256 = vlaneseq
    %v257 = vshrl.u32 %v256, 7
    %v258 = vsub.s32 0, %v257
    %v259 = vrot.slane %v232, %v258
    %v261 = vadd.f32 %v254, %v259
    %v262 = vld [vmem:[%s6] sm:$0xff]
    %v263 = vld [vmem:[%s6 + $0x8] sm:$0xff]
    %v264 = vld [vmem:[%s6 + $0x10] sm:$0xff]
    %v265 = vld [vmem:[%s6 + $0x18] sm:$0xff]
    %v266 = vld [vmem:[%s6 + $0x20] sm:$0xff]
    %v267 = vld [vmem:[%s6 + $0x28] sm:$0xff]
    %v268 = vld [vmem:[%s6 + $0x30] sm:$0xff]
    %v269 = vld [vmem:[%s6 + $0x38] sm:$0xff]
    %v270 = vld [vmem:[%s6 + $0x40] sm:$0xff]
    %v271 = vld [vmem:[%s6 + $0x48] sm:$0xff]
    %v272 = vld [vmem:[%s6 + $0x50] sm:$0xff]
    %v273 = vld [vmem:[%s6 + $0x58] sm:$0xff]
    %v274 = vld [vmem:[%s6 + $0x60] sm:$0xff]
    %v275 = vld [vmem:[%s6 + $0x68] sm:$0xff]
    %v276 = vld [vmem:[%s6 + $0x70] sm:$0xff]
    %v277 = vld [vmem:[%s6 + $0x78] sm:$0xff]
    %v278 = vld [vmem:[%s7] sm:$0x3]
    %v280 = vlaneseq
    %v281 = vshrl.u32 %v280, 7
    %v282 = vsub.s32 0, %v281
    %v283 = vrot.slane %v278, %v282
    %v284 = vlaneseq
    %v285 = vshrl.u32 %v284, 7
    %v286 = vsub.s32 1, %v285
    %v287 = vrot.slane %v278, %v286
    %v291 = vsel %vm233, %v261, 0
    %293 = vmatprep.subr.mxu0 %v263
    %294 = vmatpush1.msra.mxu0 %v262
    %295 = vmatprep.subr.mxu0 %v265
    %296 = vmatpush1.msra.mxu0 %v264
    %297 = vmatprep.subr.mxu0 %v267
    %298 = vmatpush1.msra.mxu0 %v266
    %299 = vmatprep.subr.mxu0 %v269
    %300 = vmatpush1.msra.mxu0 %v268
    %301 = vmatprep.subr.mxu0 %v271
    %302 = vmatpush1.msra.mxu0 %v270
    %303 = vmatprep.subr.mxu0 %v273
    %304 = vmatpush1.msra.mxu0 %v272
    %305 = vmatprep.subr.mxu0 %v275
    %306 = vmatpush1.msra.mxu0 %v274
    %307 = vmatprep.subr.mxu0 %v277
    %308 = vmatpush1.msra.mxu0 %v276
    %309 = vmatprep.subr.mxu0 0.0
    %310 = vmatpush1.msra.mxu0 0.0
    %311 = vmatprep.subr.mxu0 0.0
    %312 = vmatpush1.msra.mxu0 0.0
    %313 = vmatprep.subr.mxu0 0.0
    %314 = vmatpush1.msra.mxu0 0.0
    %315 = vmatprep.subr.mxu0 0.0
    %316 = vmatpush1.msra.mxu0 0.0
    %317 = vmatprep.subr.mxu0 0.0
    %318 = vmatpush1.msra.mxu0 0.0
    %319 = vmatprep.subr.mxu0 0.0
    %320 = vmatpush1.msra.mxu0 0.0
    %321 = vmatprep.subr.mxu0 0.0
    %322 = vmatpush1.msra.mxu0 0.0
    %323 = vmatprep.subr.mxu0 0.0
    %324 = vmatpush1.msra.mxu0 0.0
    %325 = vmatprep.subr.mxu0 0.0
    %326 = vmatpush1.msra.mxu0 0.0
    %327 = vmatprep.subr.mxu0 0.0
    %328 = vmatpush1.msra.mxu0 0.0
    %329 = vmatprep.subr.mxu0 0.0
    %330 = vmatpush1.msra.mxu0 0.0
    %331 = vmatprep.subr.mxu0 0.0
    %332 = vmatpush1.msra.mxu0 0.0
    %333 = vmatprep.subr.mxu0 0.0
    %334 = vmatpush1.msra.mxu0 0.0
    %335 = vmatprep.subr.mxu0 0.0
    %336 = vmatpush1.msra.mxu0 0.0
    %337 = vmatprep.subr.mxu0 0.0
    %338 = vmatpush1.msra.mxu0 0.0
    %339 = vmatprep.subr.mxu0 0.0
    %340 = vmatpush1.msra.mxu0 0.0
    %341 = vmatprep.subr.mxu0 0.0
    %342 = vmatpush1.msra.mxu0 0.0
    %343 = vmatprep.subr.mxu0 0.0
    %344 = vmatpush1.msra.mxu0 0.0
    %345 = vmatprep.subr.mxu0 0.0
    %346 = vmatpush1.msra.mxu0 0.0
    %347 = vmatprep.subr.mxu0 0.0
    %348 = vmatpush1.msra.mxu0 0.0
    %349 = vmatprep.subr.mxu0 0.0
    %350 = vmatpush1.msra.mxu0 0.0
    %351 = vmatprep.subr.mxu0 0.0
    %352 = vmatpush1.msra.mxu0 0.0
    %353 = vmatprep.subr.mxu0 0.0
    %354 = vmatpush1.msra.mxu0 0.0
    %355 = vmatprep.subr.mxu0 0.0
    %356 = vmatpush1.msra.mxu0 0.0
    %357 = vmatprep.mubr.f32.mxu0 0.0
    %358 = vmatmul.mubr.f32.gmra.mrb[0].mxu0 %v291
    %v359 = vpop.f32.mrb[0].mxu0
    %v360 = vadd.f32 %v283, %v359
    %v361 = vpop.f32.mrb[0].mxu0
    %v362 = vadd.f32 %v287, %v361
    %363 = vdwg.mxu0
    %v364 = vmul.f32 %v360, 0.17677669
    %366 = vrot.lane.b32.xlu0 %v360, 64
    %v367 = vpop.permute.xlu0 %366
    %v369 = vmul.f32 %v364, %v367
    %vm370 = vcmask 257024
    %v371 = vsel %vm370, %v369, 0.0
    %372 = vadd.xlane.f32.xlu0 %v371
    %v373 = vpop.xlane.xlu0 %372
    %v374 = vrot.slane %v360, 4
    %375 = vrot.lane.b32.xlu0 %v374, 64
    %v376 = vpop.permute.xlu0 %375
    %v378 = vmul.f32 %v364, %v376
    %v379 = vsel %vm370, %v378, 0.0
    %380 = vadd.xlane.f32.xlu0 %v379
    %v381 = vpop.xlane.xlu0 %380
    %v382 = vmax.f32 %v373, %v381
    %v383 = vsub.f32 %v373, %v382
    %v384 = vmul.f32 %v383, 1.442695
    %v385 = vpow.pop %v384
    %v386 = vsub.f32 %v381, %v382
    %v387 = vmul.f32 %v386, 1.442695
    %v388 = vpow.pop %v387
    %v389 = vadd.f32 %v385, %v388
    %v390 = vrcp.pop %v389
    %v391 = vmul.f32 %v385, %v390
    %v392 = vmul.f32 %v391, %v362
    %v393 = vmul.f32 %v388, %v390
    %v395 = vrot.slane %v362, 4
    %v397 = vmul.f32 %v393, %v395
    %v398 = vadd.f32 %v392, %v397
    %400 = vrot.lane.b32.xlu0 %v369, 96
    %v401 = vpop.permute.xlu0 %400
    %v403 = vsel %vm370, %v401, 0.0
    %404 = vadd.xlane.f32.xlu0 %v403
    %v405 = vpop.xlane.xlu0 %404
    %407 = vrot.lane.b32.xlu0 %v378, 96
    %v408 = vpop.permute.xlu0 %407
    %v410 = vsel %vm370, %v408, 0.0
    %411 = vadd.xlane.f32.xlu0 %v410
    %v412 = vpop.xlane.xlu0 %411
    %v413 = vmax.f32 %v405, %v412
    %v414 = vsub.f32 %v405, %v413
    %v415 = vmul.f32 %v414, 1.442695
    %v416 = vpow.pop %v415
    %v417 = vsub.f32 %v412, %v413
    %v418 = vmul.f32 %v417, 1.442695
    %v419 = vpow.pop %v418
    %v420 = vadd.f32 %v416, %v419
    %v421 = vrcp.pop %v420
    %v422 = vmul.f32 %v416, %v421
    %v423 = vmul.f32 %v422, %v362
    %v424 = vmul.f32 %v419, %v421
    %425 = vrot.lane.b32.xlu0 %v395, 96
    %v426 = vpop.permute.xlu0 %425
    %v428 = vmul.f32 %v424, %v426
    %430 = vrot.lane.b32.xlu0 %v428, 32
    %v431 = vpop.permute.xlu0 %430
    %v433 = vadd.f32 %v423, %v431
    %vm434 = vcmask 261120
    %v435 = vsel %vm434, %v398, %v433
    %vm436 = vcmask 261124
    %v437 = vsel %vm436, %v378, 0.0
    %438 = vadd.xlane.f32.xlu0 %v437
    %v439 = vpop.xlane.xlu0 %438
    %v440 = vsel %vm436, %v369, 0.0
    %441 = vadd.xlane.f32.xlu0 %v440
    %v442 = vpop.xlane.xlu0 %441
    %v443 = vmax.f32 %v439, %v442
    %v444 = vsub.f32 %v439, %v443
    %v445 = vmul.f32 %v444, 1.442695
    %v446 = vpow.pop %v445
    %v447 = vsub.f32 %v442, %v443
    %v448 = vmul.f32 %v447, 1.442695
    %v449 = vpow.pop %v448
    %v450 = vadd.f32 %v446, %v449
    %v451 = vrcp.pop %v450
    %v452 = vmul.f32 %v446, %v451
    %v453 = vmul.f32 %v452, %v395
    %v454 = vmul.f32 %v449, %v451
    %v455 = vmul.f32 %v454, %v362
    %v456 = vadd.f32 %v453, %v455
    %v457 = vsel %vm436, %v408, 0.0
    %458 = vadd.xlane.f32.xlu0 %v457
    %v459 = vpop.xlane.xlu0 %458
    %v460 = vsel %vm436, %v401, 0.0
    %461 = vadd.xlane.f32.xlu0 %v460
    %v462 = vpop.xlane.xlu0 %461
    %v463 = vmax.f32 %v459, %v462
    %v464 = vsub.f32 %v459, %v463
    %v465 = vmul.f32 %v464, 1.442695
    %v466 = vpow.pop %v465
    %v467 = vsub.f32 %v462, %v463
    %v468 = vmul.f32 %v467, 1.442695
    %v469 = vpow.pop %v468
    %v470 = vadd.f32 %v466, %v469
    %v471 = vrcp.pop %v470
    %v472 = vmul.f32 %v466, %v471
    %v473 = vmul.f32 %v472, %v426
    %v474 = vmul.f32 %v469, %v471
    %v475 = vmul.f32 %v474, %v362
    %477 = vrot.lane.b32.xlu0 %v475, 96
    %v478 = vpop.permute.xlu0 %477
    %v480 = vadd.f32 %v473, %v478
    %482 = vrot.lane.b32.xlu0 %v480, 32
    %v483 = vpop.permute.xlu0 %482
    %v485 = vsel %vm434, %v456, %v483
    %v486 = vsel %vm228, %v435, %v485
    %v487 = vld [vmem:[#allocation7] sm:$0xff]
    %v488 = vld [vmem:[#allocation7 + $0x8] sm:$0xff]
    %v489 = vld [vmem:[#allocation7 + $0x10] sm:$0xff]
    %v490 = vld [vmem:[#allocation7 + $0x18] sm:$0xff]
    %v491 = vld [vmem:[#allocation7 + $0x20] sm:$0xff]
    %v492 = vld [vmem:[#allocation7 + $0x28] sm:$0xff]
    %v493 = vld [vmem:[#allocation7 + $0x30] sm:$0xff]
    %v494 = vld [vmem:[#allocation7 + $0x38] sm:$0xff]
    %v495 = vld [vmem:[%s9] sm:$0x1]
    %v497 = vlaneseq
    %v498 = vshrl.u32 %v497, 7
    %v499 = vsub.s32 0, %v498
    %v500 = vrot.slane %v495, %v499
    %v503 = vsel %vm233, %v486, 0
    %505 = vmatprep.subr.mxu0 0.0
    %506 = vmatpush1.msra.mxu0 %v487
    %507 = vmatprep.subr.mxu0 0.0
    %508 = vmatpush1.msra.mxu0 %v488
    %509 = vmatprep.subr.mxu0 0.0
    %510 = vmatpush1.msra.mxu0 %v489
    %511 = vmatprep.subr.mxu0 0.0
    %512 = vmatpush1.msra.mxu0 %v490
    %513 = vmatprep.subr.mxu0 0.0
    %514 = vmatpush1.msra.mxu0 %v491
    %515 = vmatprep.subr.mxu0 0.0
    %516 = vmatpush1.msra.mxu0 %v492
    %517 = vmatprep.subr.mxu0 0.0
    %518 = vmatpush1.msra.mxu0 %v493
    %519 = vmatprep.subr.mxu0 0.0
    %520 = vmatpush1.msra.mxu0 %v494
    %521 = vmatprep.subr.mxu0 0.0
    %522 = vmatpush1.msra.mxu0 0.0
    %523 = vmatprep.subr.mxu0 0.0
    %524 = vmatpush1.msra.mxu0 0.0
    %525 = vmatprep.subr.mxu0 0.0
    %526 = vmatpush1.msra.mxu0 0.0
    %527 = vmatprep.subr.mxu0 0.0
    %528 = vmatpush1.msra.mxu0 0.0
    %529 = vmatprep.subr.mxu0 0.0
    %530 = vmatpush1.msra.mxu0 0.0
    %531 = vmatprep.subr.mxu0 0.0
    %532 = vmatpush1.msra.mxu0 0.0
    %533 = vmatprep.subr.mxu0 0.0
    %534 = vmatpush1.msra.mxu0 0.0
    %535 = vmatprep.subr.mxu0 0.0
    %536 = vmatpush1.msra.mxu0 0.0
    %537 = vmatprep.subr.mxu0 0.0
    %538 = vmatpush1.msra.mxu0 0.0
    %539 = vmatprep.subr.mxu0 0.0
    %540 = vmatpush1.msra.mxu0 0.0
    %541 = vmatprep.subr.mxu0 0.0
    %542 = vmatpush1.msra.mxu0 0.0
    %543 = vmatprep.subr.mxu0 0.0
    %544 = vmatpush1.msra.mxu0 0.0
    %545 = vmatprep.subr.mxu0 0.0
    %546 = vmatpush1.msra.mxu0 0.0
    %547 = vmatprep.subr.mxu0 0.0
    %548 = vmatpush1.msra.mxu0 0.0
    %549 = vmatprep.subr.mxu0 0.0
    %550 = vmatpush1.msra.mxu0 0.0
    %551 = vmatprep.subr.mxu0 0.0
    %552 = vmatpush1.msra.mxu0 0.0
    %553 = vmatprep.subr.mxu0 0.0
    %554 = vmatpush1.msra.mxu0 0.0
    %555 = vmatprep.subr.mxu0 0.0
    %556 = vmatpush1.msra.mxu0 0.0
    %557 = vmatprep.subr.mxu0 0.0
    %558 = vmatpush1.msra.mxu0 0.0
    %559 = vmatprep.subr.mxu0 0.0
    %560 = vmatpush1.msra.mxu0 0.0
    %561 = vmatprep.subr.mxu0 0.0
    %562 = vmatpush1.msra.mxu0 0.0
    %563 = vmatprep.subr.mxu0 0.0
    %564 = vmatpush1.msra.mxu0 0.0
    %565 = vmatprep.subr.mxu0 0.0
    %566 = vmatpush1.msra.mxu0 0.0
    %567 = vmatprep.subr.mxu0 0.0
    %568 = vmatpush1.msra.mxu0 0.0
    %569 = vmatprep.mubr.f32.mxu0 0.0
    %570 = vmatmul.mubr.f32.gmra.mrb[0].mxu0 %v503
    %v571 = vpop.f32.mrb[0].mxu0
    %v572 = vadd.f32 %v500, %v571
    %v573 = vpop.f32.mrb[0].mxu0
    %574 = vdwg.mxu0
    %v575 = vmul.f32 %v230, 3.0
    %v576 = vadd.f32 %v575, %v572
    %s577 = scalar_lea.vmem %s4, 1
    %v578 = vld [vmem:[%s577] sm:$0x1]
    %s579 = scalar_lea.vmem %s5, 1
    %v580 = vld [vmem:[%s579] sm:$0x1]
    %v581 = vsel %vm233, %v576, 0.0
    %582 = vadd.xlane.f32.xlu0 %v581
    %v583 = vpop.xlane.xlu0 %582
    %v584 = vmul.f32 %v583, %v237
    %v585 = vsub.f32 %v576, %v584
    %v586 = vmul.f32 %v585, %v585
    %v587 = vsel %vm233, %v586, 0.0
    %588 = vadd.xlane.f32.xlu0 %v587
    %v589 = vpop.xlane.xlu0 %588
    %v590 = vmul.f32 %v589, %v237
    %v591 = vadd.f32 %v590, 1e-06
    %v592 = vrsqrt.pop %v591
    %v593 = vmul.f32 %v585, %v592
    %v595 = vlaneseq
    %v596 = vshrl.u32 %v595, 7
    %v597 = vsub.s32 0, %v596
    %v598 = vrot.slane %v578, %v597
    %v600 = vmul.f32 %v593, %v598
    %v602 = vlaneseq
    %v603 = vshrl.u32 %v602, 7
    %v604 = vsub.s32 0, %v603
    %v605 = vrot.slane %v580, %v604
    %v607 = vadd.f32 %v600, %v605
    %s608 = scalar_lea.vmem %s6, 128
    %v609 = vld [vmem:[%s608] sm:$0xff]
    %v610 = vld [vmem:[%s608 + $0x8] sm:$0xff]
    %v611 = vld [vmem:[%s608 + $0x10] sm:$0xff]
    %v612 = vld [vmem:[%s608 + $0x18] sm:$0xff]
    %v613 = vld [vmem:[%s608 + $0x20] sm:$0xff]
    %v614 = vld [vmem:[%s608 + $0x28] sm:$0xff]
    %v615 = vld [vmem:[%s608 + $0x30] sm:$0xff]
    %v616 = vld [vmem:[%s608 + $0x38] sm:$0xff]
    %v617 = vld [vmem:[%s608 + $0x40] sm:$0xff]
    %v618 = vld [vmem:[%s608 + $0x48] sm:$0xff]
    %v619 = vld [vmem:[%s608 + $0x50] sm:$0xff]
    %v620 = vld [vmem:[%s608 + $0x58] sm:$0xff]
    %v621 = vld [vmem:[%s608 + $0x60] sm:$0xff]
    %v622 = vld [vmem:[%s608 + $0x68] sm:$0xff]
    %v623 = vld [vmem:[%s608 + $0x70] sm:$0xff]
    %v624 = vld [vmem:[%s608 + $0x78] sm:$0xff]
    %s625 = scalar_lea.vmem %s7, 2
    %v626 = vld [vmem:[%s625] sm:$0x3]
    %v628 = vlaneseq
    %v629 = vshrl.u32 %v628, 7
    %v630 = vsub.s32 0, %v629
    %v631 = vrot.slane %v626, %v630
    %v632 = vlaneseq
    %v633 = vshrl.u32 %v632, 7
    %v634 = vsub.s32 1, %v633
    %v635 = vrot.slane %v626, %v634
    %v639 = vsel %vm233, %v607, 0
    %641 = vmatprep.subr.mxu0 %v610
    %642 = vmatpush1.msra.mxu0 %v609
    %643 = vmatprep.subr.mxu0 %v612
    %644 = vmatpush1.msra.mxu0 %v611
    %645 = vmatprep.subr.mxu0 %v614
    %646 = vmatpush1.msra.mxu0 %v613
    %647 = vmatprep.subr.mxu0 %v616
    %648 = vmatpush1.msra.mxu0 %v615
    %649 = vmatprep.subr.mxu0 %v618
    %650 = vmatpush1.msra.mxu0 %v617
    %651 = vmatprep.subr.mxu0 %v620
    %652 = vmatpush1.msra.mxu0 %v619
    %653 = vmatprep.subr.mxu0 %v622
    %654 = vmatpush1.msra.mxu0 %v621
    %655 = vmatprep.subr.mxu0 %v624
    %656 = vmatpush1.msra.mxu0 %v623
    %657 = vmatprep.subr.mxu0 0.0
    %658 = vmatpush1.msra.mxu0 0.0
    %659 = vmatprep.subr.mxu0 0.0
    %660 = vmatpush1.msra.mxu0 0.0
    %661 = vmatprep.subr.mxu0 0.0
    %662 = vmatpush1.msra.mxu0 0.0
    %663 = vmatprep.subr.mxu0 0.0
    %664 = vmatpush1.msra.mxu0 0.0
    %665 = vmatprep.subr.mxu0 0.0
    %666 = vmatpush1.msra.mxu0 0.0
    %667 = vmatprep.subr.mxu0 0.0
    %668 = vmatpush1.msra.mxu0 0.0
    %669 = vmatprep.subr.mxu0 0.0
    %670 = vmatpush1.msra.mxu0 0.0
    %671 = vmatprep.subr.mxu0 0.0
    %672 = vmatpush1.msra.mxu0 0.0
    %673 = vmatprep.subr.mxu0 0.0
    %674 = vmatpush1.msra.mxu0 0.0
    %675 = vmatprep.subr.mxu0 0.0
    %676 = vmatpush1.msra.mxu0 0.0
    %677 = vmatprep.subr.mxu0 0.0
    %678 = vmatpush1.msra.mxu0 0.0
    %679 = vmatprep.subr.mxu0 0.0
    %680 = vmatpush1.msra.mxu0 0.0
    %681 = vmatprep.subr.mxu0 0.0
    %682 = vmatpush1.msra.mxu0 0.0
    %683 = vmatprep.subr.mxu0 0.0
    %684 = vmatpush1.msra.mxu0 0.0
    %685 = vmatprep.subr.mxu0 0.0
    %686 = vmatpush1.msra.mxu0 0.0
    %687 = vmatprep.subr.mxu0 0.0
    %688 = vmatpush1.msra.mxu0 0.0
    %689 = vmatprep.subr.mxu0 0.0
    %690 = vmatpush1.msra.mxu0 0.0
    %691 = vmatprep.subr.mxu0 0.0
    %692 = vmatpush1.msra.mxu0 0.0
    %693 = vmatprep.subr.mxu0 0.0
    %694 = vmatpush1.msra.mxu0 0.0
    %695 = vmatprep.subr.mxu0 0.0
    %696 = vmatpush1.msra.mxu0 0.0
    %697 = vmatprep.subr.mxu0 0.0
    %698 = vmatpush1.msra.mxu0 0.0
    %699 = vmatprep.subr.mxu0 0.0
    %700 = vmatpush1.msra.mxu0 0.0
    %701 = vmatprep.subr.mxu0 0.0
    %702 = vmatpush1.msra.mxu0 0.0
    %703 = vmatprep.subr.mxu0 0.0
    %704 = vmatpush1.msra.mxu0 0.0
    %705 = vmatprep.mubr.f32.mxu0 0.0
    %706 = vmatmul.mubr.f32.gmra.mrb[0].mxu0 %v639
    %v707 = vpop.f32.mrb[0].mxu0
    %v708 = vadd.f32 %v631, %v707
    %v709 = vpop.f32.mrb[0].mxu0
    %v710 = vadd.f32 %v635, %v709
    %711 = vdwg.mxu0
    %v712 = vmul.f32 %v708, 0.17677669
    %714 = vrot.lane.b32.xlu0 %v708, 64
    %v715 = vpop.permute.xlu0 %714
    %v717 = vmul.f32 %v712, %v715
    %v718 = vsel %vm370, %v717, 0.0
    %719 = vadd.xlane.f32.xlu0 %v718
    %v720 = vpop.xlane.xlu0 %719
    %v721 = vrot.slane %v708, 4
    %722 = vrot.lane.b32.xlu0 %v721, 64
    %v723 = vpop.permute.xlu0 %722
    %v725 = vmul.f32 %v712, %v723
    %v726 = vsel %vm370, %v725, 0.0
    %727 = vadd.xlane.f32.xlu0 %v726
    %v728 = vpop.xlane.xlu0 %727
    %v729 = vmax.f32 %v720, %v728
    %v730 = vsub.f32 %v720, %v729
    %v731 = vmul.f32 %v730, 1.442695
    %v732 = vpow.pop %v731
    %v733 = vsub.f32 %v728, %v729
    %v734 = vmul.f32 %v733, 1.442695
    %v735 = vpow.pop %v734
    %v736 = vadd.f32 %v732, %v735
    %v737 = vrcp.pop %v736
    %v738 = vmul.f32 %v732, %v737
    %v739 = vmul.f32 %v738, %v710
    %v740 = vmul.f32 %v735, %v737
    %v742 = vrot.slane %v710, 4
    %v744 = vmul.f32 %v740, %v742
    %v745 = vadd.f32 %v739, %v744
    %747 = vrot.lane.b32.xlu0 %v717, 96
    %v748 = vpop.permute.xlu0 %747
    %v750 = vsel %vm370, %v748, 0.0
    %751 = vadd.xlane.f32.xlu0 %v750
    %v752 = vpop.xlane.xlu0 %751
    %754 = vrot.lane.b32.xlu0 %v725, 96
    %v755 = vpop.permute.xlu0 %754
    %v757 = vsel %vm370, %v755, 0.0
    %758 = vadd.xlane.f32.xlu0 %v757
    %v759 = vpop.xlane.xlu0 %758
    %v760 = vmax.f32 %v752, %v759
    %v761 = vsub.f32 %v752, %v760
    %v762 = vmul.f32 %v761, 1.442695
    %v763 = vpow.pop %v762
    %v764 = vsub.f32 %v759, %v760
    %v765 = vmul.f32 %v764, 1.442695
    %v766 = vpow.pop %v765
    %v767 = vadd.f32 %v763, %v766
    %v768 = vrcp.pop %v767
    %v769 = vmul.f32 %v763, %v768
    %v770 = vmul.f32 %v769, %v710
    %v771 = vmul.f32 %v766, %v768
    %772 = vrot.lane.b32.xlu0 %v742, 96
    %v773 = vpop.permute.xlu0 %772
    %v775 = vmul.f32 %v771, %v773
    %777 = vrot.lane.b32.xlu0 %v775, 32
    %v778 = vpop.permute.xlu0 %777
    %v780 = vadd.f32 %v770, %v778
    %v781 = vsel %vm434, %v745, %v780
    %v782 = vsel %vm436, %v725, 0.0
    %783 = vadd.xlane.f32.xlu0 %v782
    %v784 = vpop.xlane.xlu0 %783
    %v785 = vsel %vm436, %v717, 0.0
    %786 = vadd.xlane.f32.xlu0 %v785
    %v787 = vpop.xlane.xlu0 %786
    %v788 = vmax.f32 %v784, %v787
    %v789 = vsub.f32 %v784, %v788
    %v790 = vmul.f32 %v789, 1.442695
    %v791 = vpow.pop %v790
    %v792 = vsub.f32 %v787, %v788
    %v793 = vmul.f32 %v792, 1.442695
    %v794 = vpow.pop %v793
    %v795 = vadd.f32 %v791, %v794
    %v796 = vrcp.pop %v795
    %v797 = vmul.f32 %v791, %v796
    %v798 = vmul.f32 %v797, %v742
    %v799 = vmul.f32 %v794, %v796
    %v800 = vmul.f32 %v799, %v710
    %v801 = vadd.f32 %v798, %v800
    %v802 = vsel %vm436, %v755, 0.0
    %803 = vadd.xlane.f32.xlu0 %v802
    %v804 = vpop.xlane.xlu0 %803
    %v805 = vsel %vm436, %v748, 0.0
    %806 = vadd.xlane.f32.xlu0 %v805
    %v807 = vpop.xlane.xlu0 %806
    %v808 = vmax.f32 %v804, %v807
    %v809 = vsub.f32 %v804, %v808
    %v810 = vmul.f32 %v809, 1.442695
    %v811 = vpow.pop %v810
    %v812 = vsub.f32 %v807, %v808
    %v813 = vmul.f32 %v812, 1.442695
    %v814 = vpow.pop %v813
    %v815 = vadd.f32 %v811, %v814
    %v816 = vrcp.pop %v815
    %v817 = vmul.f32 %v811, %v816
    %v818 = vmul.f32 %v817, %v773
    %v819 = vmul.f32 %v814, %v816
    %v820 = vmul.f32 %v819, %v710
    %822 = vrot.lane.b32.xlu0 %v820, 96
    %v823 = vpop.permute.xlu0 %822
    %v825 = vadd.f32 %v818, %v823
    %827 = vrot.lane.b32.xlu0 %v825, 32
    %v828 = vpop.permute.xlu0 %827
    %v830 = vsel %vm434, %v801, %v828
    %v831 = vsel %vm228, %v781, %v830
    %s832 = scalar_lea.vmem [#allocation7], 64
    %v833 = vld [vmem:[%s832] sm:$0xff]
    %v834 = vld [vmem:[%s832 + $0x8] sm:$0xff]
    %v835 = vld [vmem:[%s832 + $0x10] sm:$0xff]
    %v836 = vld [vmem:[%s832 + $0x18] sm:$0xff]
    %v837 = vld [vmem:[%s832 + $0x20] sm:$0xff]
    %v838 = vld [vmem:[%s832 + $0x28] sm:$0xff]
    %v839 = vld [vmem:[%s832 + $0x30] sm:$0xff]
    %v840 = vld [vmem:[%s832 + $0x38] sm:$0xff]
    %s841 = scalar_lea.vmem %s9, 1
    %v842 = vld [vmem:[%s841] sm:$0x1]
    %v844 = vlaneseq
    %v845 = vshrl.u32 %v844, 7
    %v846 = vsub.s32 0, %v845
    %v847 = vrot.slane %v842, %v846
    %v850 = vsel %vm233, %v831, 0
    %852 = vmatprep.subr.mxu0 0.0
    %853 = vmatpush1.msra.mxu0 %v833
    %854 = vmatprep.subr.mxu0 0.0
    %855 = vmatpush1.msra.mxu0 %v834
    %856 = vmatprep.subr.mxu0 0.0
    %857 = vmatpush1.msra.mxu0 %v835
    %858 = vmatprep.subr.mxu0 0.0
    %859 = vmatpush1.msra.mxu0 %v836
    %860 = vmatprep.subr.mxu0 0.0
    %861 = vmatpush1.msra.mxu0 %v837
    %862 = vmatprep.subr.mxu0 0.0
    %863 = vmatpush1.msra.mxu0 %v838
    %864 = vmatprep.subr.mxu0 0.0
    %865 = vmatpush1.msra.mxu0 %v839
    %866 = vmatprep.subr.mxu0 0.0
    %867 = vmatpush1.msra.mxu0 %v840
    %868 = vmatprep.subr.mxu0 0.0
    %869 = vmatpush1.msra.mxu0 0.0
    %870 = vmatprep.subr.mxu0 0.0
    %871 = vmatpush1.msra.mxu0 0.0
    %872 = vmatprep.subr.mxu0 0.0
    %873 = vmatpush1.msra.mxu0 0.0
    %874 = vmatprep.subr.mxu0 0.0
    %875 = vmatpush1.msra.mxu0 0.0
    %876 = vmatprep.subr.mxu0 0.0
    %877 = vmatpush1.msra.mxu0 0.0
    %878 = vmatprep.subr.mxu0 0.0
    %879 = vmatpush1.msra.mxu0 0.0
    %880 = vmatprep.subr.mxu0 0.0
    %881 = vmatpush1.msra.mxu0 0.0
    %882 = vmatprep.subr.mxu0 0.0
    %883 = vmatpush1.msra.mxu0 0.0
    %884 = vmatprep.subr.mxu0 0.0
    %885 = vmatpush1.msra.mxu0 0.0
    %886 = vmatprep.subr.mxu0 0.0
    %887 = vmatpush1.msra.mxu0 0.0
    %888 = vmatprep.subr.mxu0 0.0
    %889 = vmatpush1.msra.mxu0 0.0
    %890 = vmatprep.subr.mxu0 0.0
    %891 = vmatpush1.msra.mxu0 0.0
    %892 = vmatprep.subr.mxu0 0.0
    %893 = vmatpush1.msra.mxu0 0.0
    %894 = vmatprep.subr.mxu0 0.0
    %895 = vmatpush1.msra.mxu0 0.0
    %896 = vmatprep.subr.mxu0 0.0
    %897 = vmatpush1.msra.mxu0 0.0
    %898 = vmatprep.subr.mxu0 0.0
    %899 = vmatpush1.msra.mxu0 0.0
    %900 = vmatprep.subr.mxu0 0.0
    %901 = vmatpush1.msra.mxu0 0.0
    %902 = vmatprep.subr.mxu0 0.0
    %903 = vmatpush1.msra.mxu0 0.0
    %904 = vmatprep.subr.mxu0 0.0
    %905 = vmatpush1.msra.mxu0 0.0
    %906 = vmatprep.subr.mxu0 0.0
    %907 = vmatpush1.msra.mxu0 0.0
    %908 = vmatprep.subr.mxu0 0.0
    %909 = vmatpush1.msra.mxu0 0.0
    %910 = vmatprep.subr.mxu0 0.0
    %911 = vmatpush1.msra.mxu0 0.0
    %912 = vmatprep.subr.mxu0 0.0
    %913 = vmatpush1.msra.mxu0 0.0
    %914 = vmatprep.subr.mxu0 0.0
    %915 = vmatpush1.msra.mxu0 0.0
    %916 = vmatprep.mubr.f32.mxu0 0.0
    %917 = vmatmul.mubr.f32.gmra.mrb[0].mxu0 %v850
    %v918 = vpop.f32.mrb[0].mxu0
    %v919 = vadd.f32 %v847, %v918
    %v920 = vpop.f32.mrb[0].mxu0
    %921 = vdwg.mxu0
    %v922 = vmul.f32 %v576, 3.0
    %v923 = vadd.f32 %v922, %v919
    %v924 = vld [vmem:[#allocation8] sm:$0x1]
    %v925 = vld [vmem:[#allocation10] sm:$0x1]
    %v926 = vsel %vm233, %v923, 0.0
    %927 = vadd.xlane.f32.xlu0 %v926
    %v928 = vpop.xlane.xlu0 %927
    %v929 = vmul.f32 %v928, %v237
    %v930 = vsub.f32 %v923, %v929
    %v931 = vmul.f32 %v930, %v930
    %v932 = vsel %vm233, %v931, 0.0
    %933 = vadd.xlane.f32.xlu0 %v932
    %v934 = vpop.xlane.xlu0 %933
    %v935 = vmul.f32 %v934, %v237
    %v936 = vadd.f32 %v935, 1e-06
    %v937 = vrsqrt.pop %v936
    %v938 = vmul.f32 %v930, %v937
    %v940 = vlaneseq
    %v941 = vshrl.u32 %v940, 7
    %v942 = vsub.s32 0, %v941
    %v943 = vrot.slane %v924, %v942
    %v945 = vmul.f32 %v938, %v943
    %v947 = vlaneseq
    %v948 = vshrl.u32 %v947, 7
    %v949 = vsub.s32 0, %v948
    %v950 = vrot.slane %v925, %v949
    %v952 = vadd.f32 %v945, %v950
    %vm953 = vcmask 519168
    %v954 = vsel %vm953, %v952, 0.0
    %v955 = vrot.slane %v954, 4
    %v956 = vadd.f32 %v954, %v955
    %v957 = vrot.slane %v956, 2
    %v958 = vadd.f32 %v956, %v957
    %v959 = vrot.slane %v958, 1
    %v960 = vadd.f32 %v958, %v959
    %v961 = vrcp.pop 4.0
    %v962 = vmul.f32 %v960, %v961
    %v964 = vrot.slane %v952, 4
    %v966 = vsel %vm953, %v964, 0.0
    %v967 = vrot.slane %v966, 4
    %v968 = vadd.f32 %v966, %v967
    %v969 = vrot.slane %v968, 2
    %v970 = vadd.f32 %v968, %v969
    %v971 = vrot.slane %v970, 1
    %v972 = vadd.f32 %v970, %v971
    %v973 = vmul.f32 %v972, %v961
    %vm974 = vcmask 1040384
    %v975 = vsel %vm974, %v962, %v973
    %v976 = vld [vmem:[%s12] sm:$0xff]
    %v977 = vld [vmem:[%s12 + $0x8] sm:$0xff]
    %v978 = vld [vmem:[%s12 + $0x10] sm:$0xff]
    %v979 = vld [vmem:[%s12 + $0x18] sm:$0xff]
    %v980 = vld [vmem:[%s12 + $0x20] sm:$0xff]
    %v981 = vld [vmem:[%s12 + $0x28] sm:$0xff]
    %v982 = vld [vmem:[%s12 + $0x30] sm:$0xff]
    %v983 = vld [vmem:[%s12 + $0x38] sm:$0xff]
    %v984 = vld [vmem:[#allocation11] sm:$0x1]
    %v986 = vlaneseq
    %v987 = vshrl.u32 %v986, 7
    %v988 = vsub.s32 0, %v987
    %v989 = vrot.slane %v984, %v988
    %v992 = vsel %vm233, %v975, 0
    %994 = vmatprep.subr.mxu0 0.0
    %995 = vmatpush1.msra.mxu0 %v976
    %996 = vmatprep.subr.mxu0 0.0
    %997 = vmatpush1.msra.mxu0 %v977
    %998 = vmatprep.subr.mxu0 0.0
    %999 = vmatpush1.msra.mxu0 %v978
    %1000 = vmatprep.subr.mxu0 0.0
    %1001 = vmatpush1.msra.mxu0 %v979
    %1002 = vmatprep.subr.mxu0 0.0
    %1003 = vmatpush1.msra.mxu0 %v980
    %1004 = vmatprep.subr.mxu0 0.0
    %1005 = vmatpush1.msra.mxu0 %v981
    %1006 = vmatprep.subr.mxu0 0.0
    %1007 = vmatpush1.msra.mxu0 %v982
    %1008 = vmatprep.subr.mxu0 0.0
    %1009 = vmatpush1.msra.mxu0 %v983
    %1010 = vmatprep.subr.mxu0 0.0
    %1011 = vmatpush1.msra.mxu0 0.0
    %1012 = vmatprep.subr.mxu0 0.0
    %1013 = vmatpush1.msra.mxu0 0.0
    %1014 = vmatprep.subr.mxu0 0.0
    %1015 = vmatpush1.msra.mxu0 0.0
    %1016 = vmatprep.subr.mxu0 0.0
    %1017 = vmatpush1.msra.mxu0 0.0
    %1018 = vmatprep.subr.mxu0 0.0
    %1019 = vmatpush1.msra.mxu0 0.0
    %1020 = vmatprep.subr.mxu0 0.0
    %1021 = vmatpush1.msra.mxu0 0.0
    %1022 = vmatprep.subr.mxu0 0.0
    %1023 = vmatpush1.msra.mxu0 0.0
    %1024 = vmatprep.subr.mxu0 0.0
    %1025 = vmatpush1.msra.mxu0 0.0
    %1026 = vmatprep.subr.mxu0 0.0
    %1027 = vmatpush1.msra.mxu0 0.0
    %1028 = vmatprep.subr.mxu0 0.0
    %1029 = vmatpush1.msra.mxu0 0.0
    %1030 = vmatprep.subr.mxu0 0.0
    %1031 = vmatpush1.msra.mxu0 0.0
    %1032 = vmatprep.subr.mxu0 0.0
    %1033 = vmatpush1.msra.mxu0 0.0
    %1034 = vmatprep.subr.mxu0 0.0
    %1035 = vmatpush1.msra.mxu0 0.0
    %1036 = vmatprep.subr.mxu0 0.0
    %1037 = vmatpush1.msra.mxu0 0.0
    %1038 = vmatprep.subr.mxu0 0.0
    %1039 = vmatpush1.msra.mxu0 0.0
    %1040 = vmatprep.subr.mxu0 0.0
    %1041 = vmatpush1.msra.mxu0 0.0
    %1042 = vmatprep.subr.mxu0 0.0
    %1043 = vmatpush1.msra.mxu0 0.0
    %1044 = vmatprep.subr.mxu0 0.0
    %1045 = vmatpush1.msra.mxu0 0.0
    %1046 = vmatprep.subr.mxu0 0.0
    %1047 = vmatpush1.msra.mxu0 0.0
    %1048 = vmatprep.subr.mxu0 0.0
    %1049 = vmatpush1.msra.mxu0 0.0
    %1050 = vmatprep.subr.mxu0 0.0
    %1051 = vmatpush1.msra.mxu0 0.0
    %1052 = vmatprep.subr.mxu0 0.0
    %1053 = vmatpush1.msra.mxu0 0.0
    %1054 = vmatprep.subr.mxu0 0.0
    %1055 = vmatpush1.msra.mxu0 0.0
    %1056 = vmatprep.subr.mxu0 0.0
    %1057 = vmatpush1.msra.mxu0 0.0
    %1058 = vmatprep.mubr.f32.mxu0 0.0
    %1059 = vmatmul.mubr.f32.gmra.mrb[0].mxu0 %v992
    %v1060 = vpop.f32.mrb[0].mxu0
    %v1061 = vadd.f32 %v989, %v1060
    %v1062 = vpop.f32.mrb[0].mxu0
    %1063 = vdwg.mxu0
    %v1064 = vmul.f32 %v1061, 0.5
    %v1065 = vmul.f32 %v1061, 0.70710677
    %v1066 = vmax.f32 %v1065, -4.0
    %v1067 = vmin.f32 %v1066, 4.0
    %v1068 = vmul.f32 %v1067, %v1067
    %v1069 = vmul.f32 %v1068, -2.7261424e-10
    %v1070 = vadd.f32 %v1069, 2.7706815e-08
    %v1071 = vmul.f32 %v1070, %v1068
    %v1072 = vadd.f32 %v1071, -2.101024e-06
    %v1073 = vmul.f32 %v1072, %v1068
    %v1074 = vadd.f32 %v1073, -5.6925062e-05
    %v1075 = vmul.f32 %v1074, %v1068
    %v1076 = vadd.f32 %v1075, -0.00073499064
    %v1077 = vmul.f32 %v1076, %v1068
    %v1078 = vadd.f32 %v1077, -0.0029546
    %v1079 = vmul.f32 %v1078, %v1068
    %v1080 = vadd.f32 %v1079, -0.016096033
    %v1081 = vmul.f32 %v1080, %v1067
    %v1082 = vmul.f32 %v1068, -1.45660715e-05
    %v1083 = vadd.f32 %v1082, -0.00021337405
    %v1084 = vmul.f32 %v1083, %v1068
    %v1085 = vadd.f32 %v1084, -0.001682827
    %v1086 = vmul.f32 %v1085, %v1068
    %v1087 = vadd.f32 %v1086, -0.0073733293
    %v1088 = vmul.f32 %v1087, %v1068
    %v1089 = vadd.f32 %v1088, -0.014264739
    %v1090 = vrcp.pop %v1089
    %v1091 = vmul.f32 %v1081, %v1090
    %v1092 = vadd.f32 %v1091, 1.0
    %v1093 = vmul.f32 %v1064, %v1092
    %v1094 = vld [vmem:[%s14] sm:$0xff]
    %v1095 = vld [vmem:[%s14 + $0x8] sm:$0xff]
    %v1096 = vld [vmem:[%s14 + $0x10] sm:$0xff]
    %v1097 = vld [vmem:[%s14 + $0x18] sm:$0xff]
    %v1098 = vld [vmem:[%s14 + $0x20] sm:$0xff]
    %v1099 = vld [vmem:[%s14 + $0x28] sm:$0xff]
    %v1100 = vld [vmem:[%s14 + $0x30] sm:$0xff]
    %v1101 = vld [vmem:[%s14 + $0x38] sm:$0xff]
    %v1102 = vld [vmem:[%s14 + $0x40] sm:$0xff]
    %v1103 = vld [vmem:[%s14 + $0x48] sm:$0xff]
    %v1104 = vld [vmem:[%s14 + $0x50] sm:$0xff]
    %v1105 = vld [vmem:[%s14 + $0x58] sm:$0xff]
    %v1106 = vld [vmem:[%s14 + $0x60] sm:$0xff]
    %v1107 = vld [vmem:[%s14 + $0x68] sm:$0xff]
    %v1108 = vld [vmem:[%s14 + $0x70] sm:$0xff]
    %v1109 = vld [vmem:[%s14 + $0x78] sm:$0xff]
    %v1110 = vld [vmem:[#allocation13] sm:$0x1]
    %v1112 = vlaneseq
    %v1113 = vshrl.u32 %v1112, 7
    %v1114 = vsub.s32 0, %v1113
    %v1115 = vrot.slane %v1110, %v1114
    %1117 = vmatprep.subr.mxu0 0.0
    %1118 = vmatpush1.msra.mxu0 %v1094
    %1119 = vmatprep.subr.mxu0 0.0
    %1120 = vmatpush1.msra.mxu0 %v1095
    %1121 = vmatprep.subr.mxu0 0.0
    %1122 = vmatpush1.msra.mxu0 %v1096
    %1123 = vmatprep.subr.mxu0 0.0
    %1124 = vmatpush1.msra.mxu0 %v1097
    %1125 = vmatprep.subr.mxu0 0.0
    %1126 = vmatpush1.msra.mxu0 %v1098
    %1127 = vmatprep.subr.mxu0 0.0
    %1128 = vmatpush1.msra.mxu0 %v1099
    %1129 = vmatprep.subr.mxu0 0.0
    %1130 = vmatpush1.msra.mxu0 %v1100
    %1131 = vmatprep.subr.mxu0 0.0
    %1132 = vmatpush1.msra.mxu0 %v1101
    %1133 = vmatprep.subr.mxu0 0.0
    %1134 = vmatpush1.msra.mxu0 %v1102
    %1135 = vmatprep.subr.mxu0 0.0
    %1136 = vmatpush1.msra.mxu0 %v1103
    %1137 = vmatprep.subr.mxu0 0.0
    %1138 = vmatpush1.msra.mxu0 %v1104
    %1139 = vmatprep.subr.mxu0 0.0
    %1140 = vmatpush1.msra.mxu0 %v1105
    %1141 = vmatprep.subr.mxu0 0.0
    %1142 = vmatpush1.msra.mxu0 %v1106
    %1143 = vmatprep.subr.mxu0 0.0
    %1144 = vmatpush1.msra.mxu0 %v1107
    %1145 = vmatprep.subr.mxu0 0.0
    %1146 = vmatpush1.msra.mxu0 %v1108
    %1147 = vmatprep.subr.mxu0 0.0
    %1148 = vmatpush1.msra.mxu0 %v1109
    %1149 = vmatprep.subr.mxu0 0.0
    %1150 = vmatpush1.msra.mxu0 0.0
    %1151 = vmatprep.subr.mxu0 0.0
    %1152 = vmatpush1.msra.mxu0 0.0
    %1153 = vmatprep.subr.mxu0 0.0
    %1154 = vmatpush1.msra.mxu0 0.0
    %1155 = vmatprep.subr.mxu0 0.0
    %1156 = vmatpush1.msra.mxu0 0.0
    %1157 = vmatprep.subr.mxu0 0.0
    %1158 = vmatpush1.msra.mxu0 0.0
    %1159 = vmatprep.subr.mxu0 0.0
    %1160 = vmatpush1.msra.mxu0 0.0
    %1161 = vmatprep.subr.mxu0 0.0
    %1162 = vmatpush1.msra.mxu0 0.0
    %1163 = vmatprep.subr.mxu0 0.0
    %1164 = vmatpush1.msra.mxu0 0.0
    %1165 = vmatprep.subr.mxu0 0.0
    %1166 = vmatpush1.msra.mxu0 0.0
    %1167 = vmatprep.subr.mxu0 0.0
    %1168 = vmatpush1.msra.mxu0 0.0
    %1169 = vmatprep.subr.mxu0 0.0
    %1170 = vmatpush1.msra.mxu0 0.0
    %1171 = vmatprep.subr.mxu0 0.0
    %1172 = vmatpush1.msra.mxu0 0.0
    %1173 = vmatprep.subr.mxu0 0.0
    %1174 = vmatpush1.msra.mxu0 0.0
    %1175 = vmatprep.subr.mxu0 0.0
    %1176 = vmatpush1.msra.mxu0 0.0
    %1177 = vmatprep.subr.mxu0 0.0
    %1178 = vmatpush1.msra.mxu0 0.0
    %1179 = vmatprep.subr.mxu0 0.0
    %1180 = vmatpush1.msra.mxu0 0.0
    %1181 = vmatprep.mubr.f32.mxu0 0.0
    %1182 = vmatmul.mubr.f32.gmra.mrb[0].mxu0 %v1093
    %v1183 = vpop.f32.mrb[0].mxu0
    %v1184 = vadd.f32 %v1115, %v1183
    %v1185 = vpop.f32.mrb[0].mxu0
    %1186 = vdwg.mxu0
    %vm1187 = vcmask 41984
    %v1188 = vsel %vm1187, %v1184, -inf
    %1189 = vmax.xlane.f32.xlu0 %v1188
    %v1190 = vpop.xlane.xlu0 %1189
    %v1191 = vsub.f32 %v1184, %v1190
    %v1192 = vmul.f32 %v1191, 1.442695
    %v1193 = vpow.pop %v1192
    %v1194 = vsel %vm1187, %v1193, 0.0
    %1195 = vadd.xlane.f32.xlu0 %v1194
    %v1196 = vpop.xlane.xlu0 %1195
    %v1197 = vrcp.pop %v1196
    %v1198 = vmul.f32 %v1193, %v1197
    %1199 = vst.msk [vmem:[#allocation14] sm:$0x3] %vm1187, %v1198
    // Predicated region
    $region94: #{forward.1} parent=1 // pred_check
      _
    $region95: #{forward.1} parent=1 // pred_check_branch
      %1201 = sbr.rel (0) target = $region97
    $region96: #{forward.1} parent=1 // pred_region
      %s1203 = ssub.s32 32, 32
      %1204 = vsyncadd [#allocation4], %s1203
      %s1206 = sshll.u32 [#allocation14], 4
      %s1207 = int_to_ptr.vmem [resolvable:$true] %s1206
      %1209 = dma.vmem_to_hbm [thread:$0]  %s1207, 32, %s16, [#allocation4]
    $region97: #{forward.1} parent=1 // pred_fallthru
      _
    // Predicated region
    $region98: #{forward.1} parent=1 // pred_check
      _
    $region99: #{forward.1} parent=1 // pred_check_branch
      %1211 = sbr.rel (0) target = $region101
    $region100: #{forward.1} parent=1 // pred_region
      %1212 = dma.done [#allocation4], 32
    $region101: #{forward.1} parent=1 // pred_fallthru
      _
    %1213 = vsyncpa [#allocation3], 1
    %1214 = vsyncpa [#allocation6], 1
    %1215 = vsyncpa [#allocation9], 1
    %1216 = vsyncpa [#allocation12], 1
    %1217 = vsyncpa [#allocation4], 1

</llo_original>
